<compile_context>
chip_gen: v5e
topology: v5e:2x2
jax: 0.10.0
libtpu: 0.0.40
codegen_flags: <defaults>
</compile_context>

<pallas_src>
import jax
import jax.numpy as jnp
from jax.experimental import pallas as pl
from jax.experimental.pallas import tpu as pltpu


OUT_PAD = 128   # final Linear(., 1) output padded to a lane-dense 128 columns


def _round_up(x, m):
    return ((x + m - 1) // m) * m


def deepdra_kernel(cell_x_ref, drug_x_ref,
                   wc_ref, bc_ref,            # cell encoder  (K-streamed)
                   wd_ref, bd_ref,            # drug encoder
                   w1c_ref, w1d_ref, b1_ref,  # MLP layer 1 (concat split in two)
                   w2_ref, b2_ref,            # MLP layer 2
                   out_ref, zc_ref, zd_ref,
                   acc_ref):
    k = pl.program_id(1)

    @pl.when(k == 0)
    def _():
        acc_ref[...] = jnp.zeros_like(acc_ref)

    # Partial cell-encoder matmul over this K slice: bf16 MXU operands
    # (activations cast in-kernel), f32 accumulation in VMEM scratch.
    acc_ref[...] += jnp.dot(cell_x_ref[...].astype(jnp.bfloat16), wc_ref[...],
                            preferred_element_type=jnp.float32)

    @pl.when(k == pl.num_programs(1) - 1)
    def _():
        z_cell = acc_ref[...] + bc_ref[...]                       # f32 bias add
        z_drug = jnp.dot(drug_x_ref[...].astype(jnp.bfloat16), wd_ref[...],
                         preferred_element_type=jnp.float32) + bd_ref[...]
        zc_ref[...] = z_cell.astype(zc_ref.dtype)                 # bf16 writeback
        zd_ref[...] = z_drug.astype(zd_ref.dtype)

        # MLP layer 1 on cat([z_cell, z_drug], dim=1): concat folded into 2 dots.
        h = (jnp.dot(z_cell.astype(jnp.bfloat16), w1c_ref[...],
                     preferred_element_type=jnp.float32)
             + jnp.dot(z_drug.astype(jnp.bfloat16), w1d_ref[...],
                       preferred_element_type=jnp.float32)
             + b1_ref[...])
        h = jnp.maximum(h, 0.0)      # ReLU; Dropout(0.3) is identity at inference.

        # MLP layer 2 (output columns zero-padded to 128, lane-dense) + sigmoid.
        logits = jnp.dot(h.astype(jnp.bfloat16), w2_ref[...],
                         preferred_element_type=jnp.float32) + b2_ref[...]
        out_ref[...] = jax.nn.sigmoid(logits).astype(out_ref.dtype)


def prepare_params(params, *, k_tile=None, k_cap=2048):
    """One-time pad + cast of weights/biases (kept out of the per-call hot path).

    Weights become bf16 MXU operands; biases stay f32 (added post f32-accumulate).
    Output/latent feature dims are zero-padded to multiples of 128 (lane-dense
    vregs, unmasked stores).  The cell-encoder K dim is tiled (k_tile) so huge
    gene-expression inputs stream through a K grid axis instead of one giant
    VMEM block.
    """
    cell_dim, cell_lat = params["wc"].shape
    drug_dim, drug_lat = params["wd"].shape
    hidden = params["w1c"].shape[1]

    if k_tile is None:
        kt = cell_dim if cell_dim <= k_cap else 1024
    else:
        kt = min(int(k_tile), cell_dim)
    if kt == cell_dim:
        c_pad = cell_dim                      # single K step, no feature padding
    else:
        kt = _round_up(kt, 128)
        c_pad = _round_up(cell_dim, kt)

    lc_pad = _round_up(cell_lat, 128)
    ld_pad = _round_up(drug_lat, 128)
    h_pad = _round_up(hidden, 128)

    bf16, f32 = jnp.bfloat16, jnp.float32

    def pad2(a, rows, cols, dtype):
        a = a.astype(dtype)
        return jnp.pad(a, ((0, rows - a.shape[0]), (0, cols - a.shape[1])))

    prepped = {
        "wc": pad2(params["wc"], c_pad, lc_pad, bf16),
        "bc": pad2(params["bc"], 1, lc_pad, f32),
        "wd": pad2(params["wd"], drug_dim, ld_pad, bf16),
        "bd": pad2(params["bd"], 1, ld_pad, f32),
        "w1c": pad2(params["w1c"], lc_pad, h_pad, bf16),
        "w1d": pad2(params["w1d"], ld_pad, h_pad, bf16),
        "b1": pad2(params["b1"], 1, h_pad, f32),
        "w2": pad2(params["w2"], h_pad, OUT_PAD, bf16),
        "b2": pad2(params["b2"], 1, OUT_PAD, f32),
    }
    meta = dict(cell_dim=cell_dim, drug_dim=drug_dim,
                cell_lat=cell_lat, drug_lat=drug_lat, hidden=hidden,
                c_pad=c_pad, kt=kt, lc_pad=lc_pad, ld_pad=ld_pad, h_pad=h_pad)
    return prepped, meta


def deepdra_forward(cell_x, drug_x, prepped, meta, *, b_tile=512):
    """Fused forward. Returns (mlp_out [B,1], z_cell [B,Lc], z_drug [B,Ld]), bf16."""
    B = cell_x.shape[0]
    cell_dim, drug_dim = meta["cell_dim"], meta["drug_dim"]
    c_pad, kt = meta["c_pad"], meta["kt"]
    lc, ld = meta["cell_lat"], meta["drug_lat"]
    lcp, ldp, hp = meta["lc_pad"], meta["ld_pad"], meta["h_pad"]

    # Batch tile: multiple of 8, large by default (mem-bound kernel -> big tiles
    # reach ~85% of HBM roofline and fill the 256-row MXU), clamped for tiny B.
    bt = _round_up(min(b_tile, B), 8)
    if B >= 16 and _round_up(B, bt) // bt < 2:
        # Keep >= 2 batch-grid steps so v7x's two TensorCores both get work.
        bt = _round_up((B + 1) // 2, 8)
    b_pad = _round_up(B, bt)
    nk = c_pad // kt
    grid = (b_pad // bt, nk)

    # Activations stream raw (f32) and are cast to bf16 in-kernel: single HBM
    # read, no wrapper pad+cast pass.  Padding only if batch / K-tiling demand it.
    if b_pad != B or c_pad != cell_dim:
        cell_x = jnp.pad(cell_x, ((0, b_pad - B), (0, c_pad - cell_dim)))
    if b_pad != B:
        drug_x = jnp.pad(drug_x, ((0, b_pad - B), (0, 0)))

    act_itemsize = jnp.dtype(cell_x.dtype).itemsize
    w_bytes = sum(int(v.size) * v.dtype.itemsize for v in prepped.values())
    est_vmem = (2 * bt * kt * act_itemsize          # cell_x (double-buffered)
                + 2 * bt * drug_dim * act_itemsize  # drug_x
                + 2 * w_bytes                       # weights/biases (worst case 2x)
                + 2 * bt * (OUT_PAD + lcp + ldp) * 2  # bf16 outputs
                + bt * lcp * 4)                     # f32 accumulator scratch
    vmem_limit = int(min(max(2 * est_vmem, 16 * 1024 * 1024), 64 * 1024 * 1024))

    flops = 2 * b_pad * (c_pad * lcp + drug_dim * ldp
                         + lcp * hp + ldp * hp + hp * OUT_PAD)
    bytes_accessed = (b_pad * c_pad * act_itemsize + b_pad * drug_dim * act_itemsize
                      + w_bytes + b_pad * (OUT_PAD + lcp + ldp) * 2)
    cost = pl.CostEstimate(flops=flops, transcendentals=b_pad,
                           bytes_accessed=bytes_accessed)

    def _call(single_buffer_weights):
        def wspec(shape):
            # Constant-index weights/biases: single-buffer them so they do not
            # burn 2x VMEM (they are DMA'd exactly once regardless).
            if single_buffer_weights:
                return pl.BlockSpec(shape, lambda i, k: (0, 0),
                                    pipeline_mode=pl.Buffered(1))
            return pl.BlockSpec(shape, lambda i, k: (0, 0))

        in_specs = [
            pl.BlockSpec((bt, kt), lambda i, k: (i, k)),        # cell_x (K-streamed)
            pl.BlockSpec((bt, drug_dim), lambda i, k: (i, 0)),  # drug_x
            pl.BlockSpec((kt, lcp), lambda i, k: (k, 0)),       # wc (K-streamed)
            wspec((1, lcp)),                                    # bc
            wspec((drug_dim, ldp)),                             # wd
            wspec((1, ldp)),                                    # bd
            wspec((lcp, hp)),                                   # w1c
            wspec((ldp, hp)),                                   # w1d
            wspec((1, hp)),                                     # b1
            wspec((hp, OUT_PAD)),                               # w2
            wspec((1, OUT_PAD)),                                # b2
        ]
        out_specs = (
            pl.BlockSpec((bt, OUT_PAD), lambda i, k: (i, 0)),
            pl.BlockSpec((bt, lcp), lambda i, k: (i, 0)),
            pl.BlockSpec((bt, ldp), lambda i, k: (i, 0)),
        )
        out_shape = (
            jax.ShapeDtypeStruct((b_pad, OUT_PAD), jnp.bfloat16),  # sigmoid out
            jax.ShapeDtypeStruct((b_pad, lcp), jnp.bfloat16),      # z_cell (padded)
            jax.ShapeDtypeStruct((b_pad, ldp), jnp.bfloat16),      # z_drug (padded)
        )
        return pl.pallas_call(
            deepdra_kernel,
            out_shape=out_shape,
            grid=grid,
            in_specs=in_specs,
            out_specs=out_specs,
            scratch_shapes=[pltpu.VMEM((bt, lcp), jnp.float32)],
            compiler_params=pltpu.CompilerParams(
                dimension_semantics=("parallel", "arbitrary"),
                vmem_limit_bytes=vmem_limit),
            cost_estimate=cost,
        )(cell_x, drug_x,
          prepped["wc"], prepped["bc"], prepped["wd"], prepped["bd"],
          prepped["w1c"], prepped["w1d"], prepped["b1"],
          prepped["w2"], prepped["b2"])

    try:
        out_p, zc_p, zd_p = _call(True)
    except Exception:
        # Fallback for JAX builds that reject pipeline_mode=pl.Buffered(1).
        out_p, zc_p, zd_p = _call(False)

    # Strip padding in the wrapper (layout plumbing, not compute).
    return out_p[:B, :1], zc_p[:B, :lc], zd_p[:B, :ld]


def init_params(key, cell_dim, drug_dim, cell_lat, drug_lat, hidden):
    ks = jax.random.split(key, 8)
    scale = 0.05
    # Weights stored as [in, out] (i.e. PyTorch weight.T).
    wc = scale * jax.random.normal(ks[0], (cell_dim, cell_lat), jnp.float32)
    bc = scale * jax.random.normal(ks[1], (1, cell_lat), jnp.float32)
    wd = scale * jax.random.normal(ks[2], (drug_dim, drug_lat), jnp.float32)
    bd = scale * jax.random.normal(ks[3], (1, drug_lat), jnp.float32)
    w1 = scale * jax.random.normal(ks[4], (cell_lat + drug_lat, hidden), jnp.float32)
    b1 = scale * jax.random.normal(ks[5], (1, hidden), jnp.float32)
    w2 = scale * jax.random.normal(ks[6], (hidden, 1), jnp.float32)
    b2 = scale * jax.random.normal(ks[7], (1, 1), jnp.float32)
    return {
        "wc": wc, "bc": bc, "wd": wd, "bd": bd,
        "w1c": w1[:cell_lat], "w1d": w1[cell_lat:], "b1": b1,
        "w2": w2, "b2": b2,
    }


def reference_forward(cell_x, drug_x, p):
    # Plain-JAX reference mirroring the PyTorch forward (eval mode) with the
    # same bf16-operand / f32-accumulate precision policy as the kernel.
    bf = jnp.bfloat16
    z_cell = jnp.dot(cell_x.astype(bf), p["wc"].astype(bf),
                     preferred_element_type=jnp.float32) + p["bc"]
    z_drug = jnp.dot(drug_x.astype(bf), p["wd"].astype(bf),
                     preferred_element_type=jnp.float32) + p["bd"]
    combined = jnp.concatenate([z_cell, z_drug], axis=1).astype(bf)
    w1 = jnp.concatenate([p["w1c"], p["w1d"]], axis=0).astype(bf)
    h = jnp.maximum(jnp.dot(combined, w1, preferred_element_type=jnp.float32)
                    + p["b1"], 0.0)
    logits = jnp.dot(h.astype(bf), p["w2"].astype(bf),
                     preferred_element_type=jnp.float32) + p["b2"]
    return jax.nn.sigmoid(logits), z_cell, z_drug


if __name__ == "__main__":
    key = jax.random.PRNGKey(0)
    k_params, k_cell, k_drug, k_params2, k_cell2 = jax.random.split(key, 5)

    # Small synthetic shapes consistent with the module's forward.
    B = 8
    CELL_DIM, DRUG_DIM = 32, 24
    CELL_LAT, DRUG_LAT = 16, 16
    HIDDEN = 32

    params = init_params(k_params, CELL_DIM, DRUG_DIM, CELL_LAT, DRUG_LAT, HIDDEN)
    cell_x = jax.random.normal(k_cell, (B, CELL_DIM), jnp.float32)
    drug_x = jax.random.normal(k_drug, (B, DRUG_DIM), jnp.float32)

    prepped, meta = prepare_params(params)
    out, z_cell, z_drug = deepdra_forward(cell_x, drug_x, prepped, meta)
    jax.block_until_ready((out, z_cell, z_drug))

    ref_out, ref_zc, ref_zd = reference_forward(cell_x, drug_x, params)
    assert out.shape == (B, 1)
    assert z_cell.shape == (B, CELL_LAT) and z_drug.shape == (B, DRUG_LAT)
    assert jnp.allclose(out.astype(jnp.float32), ref_out, atol=2e-2), "mlp output mismatch"
    assert jnp.allclose(z_cell.astype(jnp.float32), ref_zc, atol=2e-2), "z_cell mismatch"
    assert jnp.allclose(z_drug.astype(jnp.float32), ref_zd, atol=2e-2), "z_drug mismatch"

    # Exercise the K-reduction path (multi-step grid axis over the cell input dim).
    CELL_DIM2 = 256
    params2 = init_params(k_params2, CELL_DIM2, DRUG_DIM, CELL_LAT, DRUG_LAT, HIDDEN)
    cell_x2 = jax.random.normal(k_cell2, (B, CELL_DIM2), jnp.float32)
    prepped2, meta2 = prepare_params(params2, k_tile=128)   # -> 2 K steps
    out2, zc2, zd2 = deepdra_forward(cell_x2, drug_x, prepped2, meta2)
    jax.block_until_ready((out2, zc2, zd2))

    ref_out2, ref_zc2, ref_zd2 = reference_forward(cell_x2, drug_x, params2)
    assert jnp.allclose(out2.astype(jnp.float32), ref_out2, atol=2e-2), "K-tiled mlp mismatch"
    assert jnp.allclose(zc2.astype(jnp.float32), ref_zc2, atol=2e-2), "K-tiled z_cell mismatch"
    assert jnp.allclose(zd2.astype(jnp.float32), ref_zd2, atol=2e-2), "K-tiled z_drug mismatch"

    print("KERNEL_OK")
</pallas_src>

<mosaic_0001>
module attributes {stable_mosaic.version = 11 : i64} {
  func.func @deepdra_kernel(%arg0: i32, %arg1: i32, %arg2: memref<8x32xf32, #tpu.memory_space<vmem>>, %arg3: memref<8x24xf32, #tpu.memory_space<vmem>>, %arg4: memref<32x128xbf16, #tpu.memory_space<vmem>>, %arg5: memref<1x128xf32, #tpu.memory_space<vmem>>, %arg6: memref<24x128xbf16, #tpu.memory_space<vmem>>, %arg7: memref<1x128xf32, #tpu.memory_space<vmem>>, %arg8: memref<128x128xbf16, #tpu.memory_space<vmem>>, %arg9: memref<128x128xbf16, #tpu.memory_space<vmem>>, %arg10: memref<1x128xf32, #tpu.memory_space<vmem>>, %arg11: memref<128x128xbf16, #tpu.memory_space<vmem>>, %arg12: memref<1x128xf32, #tpu.memory_space<vmem>>, %arg13: memref<8x128xbf16, #tpu.memory_space<vmem>>, %arg14: memref<8x128xbf16, #tpu.memory_space<vmem>>, %arg15: memref<8x128xbf16, #tpu.memory_space<vmem>>, %arg16: memref<8x128xf32, #tpu.memory_space<vmem>>) attributes {dimension_semantics = [#tpu.dimension_semantics<parallel>, #tpu.dimension_semantics<arbitrary>], iteration_bounds = array<i64: 1, 1>, scalar_prefetch = 0 : i64, scratch_operands = 1 : i64, tpu.core_type = #tpu.core_type<tc>, window_params = [{transform_indices = @transform_0, window_bounds = array<i64: 8, 32>}, {transform_indices = @transform_1, window_bounds = array<i64: 8, 24>}, {transform_indices = @transform_2, window_bounds = array<i64: 32, 128>}, {pipeline_mode = #tpu.pipeline_mode<synchronous>, transform_indices = @transform_3, window_bounds = array<i64: 1, 128>}, {pipeline_mode = #tpu.pipeline_mode<synchronous>, transform_indices = @transform_4, window_bounds = array<i64: 24, 128>}, {pipeline_mode = #tpu.pipeline_mode<synchronous>, transform_indices = @transform_5, window_bounds = array<i64: 1, 128>}, {pipeline_mode = #tpu.pipeline_mode<synchronous>, transform_indices = @transform_6, window_bounds = array<i64: 128, 128>}, {pipeline_mode = #tpu.pipeline_mode<synchronous>, transform_indices = @transform_7, window_bounds = array<i64: 128, 128>}, {pipeline_mode = #tpu.pipeline_mode<synchronous>, transform_indices = @transform_8, window_bounds = array<i64: 1, 128>}, {pipeline_mode = #tpu.pipeline_mode<synchronous>, transform_indices = @transform_9, window_bounds = array<i64: 128, 128>}, {pipeline_mode = #tpu.pipeline_mode<synchronous>, transform_indices = @transform_10, window_bounds = array<i64: 1, 128>}, {transform_indices = @transform_11, window_bounds = array<i64: 8, 128>}, {transform_indices = @transform_12, window_bounds = array<i64: 8, 128>}, {transform_indices = @transform_13, window_bounds = array<i64: 8, 128>}]} {
    %c0_i32 = arith.constant 0 : i32
    %0 = arith.cmpi eq, %arg1, %c0_i32 : i32
    %1 = arith.extui %0 : i1 to i32
    %c0_i32_0 = arith.constant 0 : i32
    %2 = arith.cmpi ne, %1, %c0_i32_0 : i32
    scf.if %2 {
      %cst_10 = arith.constant 0.000000e+00 : f32
      %13 = vector.broadcast %cst_10 : f32 to vector<8x128xf32>
      %c0_11 = arith.constant 0 : index
      %c0_12 = arith.constant 0 : index
      %14 = vector.load %arg16[%c0_11, %c0_12] : memref<8x128xf32, #tpu.memory_space<vmem>>, vector<8x128xf32>
      tpu.vector_store %arg16[%c0_11, %c0_12], %13 {strides = array<i32>} : memref<8x128xf32, #tpu.memory_space<vmem>>, vector<8x128xf32>,
    } else {
    }
    %c0 = arith.constant 0 : index
    %c0_1 = arith.constant 0 : index
    %3 = vector.load %arg16[%c0, %c0_1] : memref<8x128xf32, #tpu.memory_space<vmem>>, vector<8x128xf32>
    %c0_2 = arith.constant 0 : index
    %c0_3 = arith.constant 0 : index
    %4 = vector.load %arg2[%c0_2, %c0_3] : memref<8x32xf32, #tpu.memory_space<vmem>>, vector<8x32xf32>
    %5 = arith.truncf %4 : vector<8x32xf32> to vector<8x32xbf16>
    %c0_4 = arith.constant 0 : index
    %c0_5 = arith.constant 0 : index
    %6 = vector.load %arg4[%c0_4, %c0_5] : memref<32x128xbf16, #tpu.memory_space<vmem>>, vector<32x128xbf16>
    %cst = arith.constant dense<0.000000e+00> : vector<8x128xf32>
    %7 = tpu.matmul %5, %6, %cst {dimension_numbers = #tpu.dot_dimension_numbers<[1], [0], [0], [1], [0, 0, 1, 1], [], []>} : vector<8x32xbf16>, vector<32x128xbf16>, vector<8x128xf32> -> vector<8x128xf32>
    %8 = arith.addf %3, %7 : vector<8x128xf32>
    %c0_6 = arith.constant 0 : index
    %c0_7 = arith.constant 0 : index
    %9 = vector.load %arg16[%c0_6, %c0_7] : memref<8x128xf32, #tpu.memory_space<vmem>>, vector<8x128xf32>
    tpu.vector_store %arg16[%c0_6, %c0_7], %8 {strides = array<i32>} : memref<8x128xf32, #tpu.memory_space<vmem>>, vector<8x128xf32>,
    %c0_i32_8 = arith.constant 0 : i32
    %10 = arith.cmpi eq, %arg1, %c0_i32_8 : i32
    %11 = arith.extui %10 : i1 to i32
    %c0_i32_9 = arith.constant 0 : i32
    %12 = arith.cmpi ne, %11, %c0_i32_9 : i32
    scf.if %12 {
      %c0_10 = arith.constant 0 : index
      %c0_11 = arith.constant 0 : index
      %13 = vector.load %arg16[%c0_10, %c0_11] : memref<8x128xf32, #tpu.memory_space<vmem>>, vector<8x128xf32>
      %c0_12 = arith.constant 0 : index
      %c0_13 = arith.constant 0 : index
      %14 = vector.load %arg5[%c0_12, %c0_13] : memref<1x128xf32, #tpu.memory_space<vmem>>, vector<1x128xf32>
      %15 = vector.broadcast %14 : vector<1x128xf32> to vector<8x128xf32>
      %16 = arith.addf %13, %15 : vector<8x128xf32>
      %c0_14 = arith.constant 0 : index
      %c0_15 = arith.constant 0 : index
      %17 = vector.load %arg3[%c0_14, %c0_15] : memref<8x24xf32, #tpu.memory_space<vmem>>, vector<8x24xf32>
      %18 = arith.truncf %17 : vector<8x24xf32> to vector<8x24xbf16>
      %c0_16 = arith.constant 0 : index
      %c0_17 = arith.constant 0 : index
      %19 = vector.load %arg6[%c0_16, %c0_17] : memref<24x128xbf16, #tpu.memory_space<vmem>>, vector<24x128xbf16>
      %cst_18 = arith.constant dense<0.000000e+00> : vector<8x128xf32>
      %20 = tpu.matmul %18, %19, %cst_18 {dimension_numbers = #tpu.dot_dimension_numbers<[1], [0], [0], [1], [0, 0, 1, 1], [], []>} : vector<8x24xbf16>, vector<24x128xbf16>, vector<8x128xf32> -> vector<8x128xf32>
      %c0_19 = arith.constant 0 : index
      %c0_20 = arith.constant 0 : index
      %21 = vector.load %arg7[%c0_19, %c0_20] : memref<1x128xf32, #tpu.memory_space<vmem>>, vector<1x128xf32>
      %22 = vector.broadcast %21 : vector<1x128xf32> to vector<8x128xf32>
      %23 = arith.addf %20, %22 : vector<8x128xf32>
      %24 = arith.truncf %16 : vector<8x128xf32> to vector<8x128xbf16>
      %c0_21 = arith.constant 0 : index
      %c0_22 = arith.constant 0 : index
      %25 = vector.load %arg14[%c0_21, %c0_22] : memref<8x128xbf16, #tpu.memory_space<vmem>>, vector<8x128xbf16>
      tpu.vector_store %arg14[%c0_21, %c0_22], %24 {strides = array<i32>} : memref<8x128xbf16, #tpu.memory_space<vmem>>, vector<8x128xbf16>,
      %26 = arith.truncf %23 : vector<8x128xf32> to vector<8x128xbf16>
      %c0_23 = arith.constant 0 : index
      %c0_24 = arith.constant 0 : index
      %27 = vector.load %arg15[%c0_23, %c0_24] : memref<8x128xbf16, #tpu.memory_space<vmem>>, vector<8x128xbf16>
      tpu.vector_store %arg15[%c0_23, %c0_24], %26 {strides = array<i32>} : memref<8x128xbf16, #tpu.memory_space<vmem>>, vector<8x128xbf16>,
      %28 = arith.truncf %16 : vector<8x128xf32> to vector<8x128xbf16>
      %c0_25 = arith.constant 0 : index
      %c0_26 = arith.constant 0 : index
      %29 = vector.load %arg8[%c0_25, %c0_26] : memref<128x128xbf16, #tpu.memory_space<vmem>>, vector<128x128xbf16>
      %cst_27 = arith.constant dense<0.000000e+00> : vector<8x128xf32>
      %30 = tpu.matmul %28, %29, %cst_27 {dimension_numbers = #tpu.dot_dimension_numbers<[1], [0], [0], [1], [0, 0, 1, 1], [], []>} : vector<8x128xbf16>, vector<128x128xbf16>, vector<8x128xf32> -> vector<8x128xf32>
      %31 = arith.truncf %23 : vector<8x128xf32> to vector<8x128xbf16>
      %c0_28 = arith.constant 0 : index
      %c0_29 = arith.constant 0 : index
      %32 = vector.load %arg9[%c0_28, %c0_29] : memref<128x128xbf16, #tpu.memory_space<vmem>>, vector<128x128xbf16>
      %cst_30 = arith.constant dense<0.000000e+00> : vector<8x128xf32>
      %33 = tpu.matmul %31, %32, %cst_30 {dimension_numbers = #tpu.dot_dimension_numbers<[1], [0], [0], [1], [0, 0, 1, 1], [], []>} : vector<8x128xbf16>, vector<128x128xbf16>, vector<8x128xf32> -> vector<8x128xf32>
      %34 = arith.addf %30, %33 : vector<8x128xf32>
      %c0_31 = arith.constant 0 : index
      %c0_32 = arith.constant 0 : index
      %35 = vector.load %arg10[%c0_31, %c0_32] : memref<1x128xf32, #tpu.memory_space<vmem>>, vector<1x128xf32>
      %36 = vector.broadcast %35 : vector<1x128xf32> to vector<8x128xf32>
      %37 = arith.addf %34, %36 : vector<8x128xf32>
      %cst_33 = arith.constant 0.000000e+00 : f32
      %38 = vector.broadcast %cst_33 : f32 to vector<8x128xf32>
      %39 = arith.maximumf %37, %38 : vector<8x128xf32>
      %40 = arith.truncf %39 : vector<8x128xf32> to vector<8x128xbf16>
      %c0_34 = arith.constant 0 : index
      %c0_35 = arith.constant 0 : index
      %41 = vector.load %arg11[%c0_34, %c0_35] : memref<128x128xbf16, #tpu.memory_space<vmem>>, vector<128x128xbf16>
      %cst_36 = arith.constant dense<0.000000e+00> : vector<8x128xf32>
      %42 = tpu.matmul %40, %41, %cst_36 {dimension_numbers = #tpu.dot_dimension_numbers<[1], [0], [0], [1], [0, 0, 1, 1], [], []>} : vector<8x128xbf16>, vector<128x128xbf16>, vector<8x128xf32> -> vector<8x128xf32>
      %c0_37 = arith.constant 0 : index
      %c0_38 = arith.constant 0 : index
      %43 = vector.load %arg12[%c0_37, %c0_38] : memref<1x128xf32, #tpu.memory_space<vmem>>, vector<1x128xf32>
      %44 = vector.broadcast %43 : vector<1x128xf32> to vector<8x128xf32>
      %45 = arith.addf %42, %44 : vector<8x128xf32>
      %46 = arith.negf %45 : vector<8x128xf32>
      %47 = math.exp %46 : vector<8x128xf32>
      %cst_39 = arith.constant 1.000000e+00 : f32
      %48 = vector.broadcast %cst_39 : f32 to vector<8x128xf32>
      %49 = arith.addf %48, %47 : vector<8x128xf32>
      %50 = arith.divf %48, %49 : vector<8x128xf32>
      %51 = arith.truncf %50 : vector<8x128xf32> to vector<8x128xbf16>
      %c0_40 = arith.constant 0 : index
      %c0_41 = arith.constant 0 : index
      %52 = vector.load %arg13[%c0_40, %c0_41] : memref<8x128xbf16, #tpu.memory_space<vmem>>, vector<8x128xbf16>
      tpu.vector_store %arg13[%c0_40, %c0_41], %51 {strides = array<i32>} : memref<8x128xbf16, #tpu.memory_space<vmem>>, vector<8x128xbf16>,
    } else {
    }
    return
  }
  func.func @transform_0(%arg0: i32, %arg1: i32) -> (i32, i32) {
    %c0_i32 = arith.constant 0 : i32
    return %arg0, %arg1 : i32, i32
  }
  func.func @transform_1(%arg0: i32, %arg1: i32) -> (i32, i32) {
    %c0_i32 = arith.constant 0 : i32
    %c0_i32_0 = arith.constant 0 : i32
    return %arg0, %c0_i32 : i32, i32
  }
  func.func @transform_2(%arg0: i32, %arg1: i32) -> (i32, i32) {
    %c0_i32 = arith.constant 0 : i32
    %c0_i32_0 = arith.constant 0 : i32
    return %arg1, %c0_i32 : i32, i32
  }
  func.func @transform_3(%arg0: i32, %arg1: i32) -> (i32, i32) {
    %c0_i32 = arith.constant 0 : i32
    %c0_i32_0 = arith.constant 0 : i32
    %c0_i32_1 = arith.constant 0 : i32
    return %c0_i32, %c0_i32_0 : i32, i32
  }
  func.func @transform_4(%arg0: i32, %arg1: i32) -> (i32, i32) {
    %c0_i32 = arith.constant 0 : i32
    %c0_i32_0 = arith.constant 0 : i32
    %c0_i32_1 = arith.constant 0 : i32
    return %c0_i32, %c0_i32_0 : i32, i32
  }
  func.func @transform_5(%arg0: i32, %arg1: i32) -> (i32, i32) {
    %c0_i32 = arith.constant 0 : i32
    %c0_i32_0 = arith.constant 0 : i32
    %c0_i32_1 = arith.constant 0 : i32
    return %c0_i32, %c0_i32_0 : i32, i32
  }
  func.func @transform_6(%arg0: i32, %arg1: i32) -> (i32, i32) {
    %c0_i32 = arith.constant 0 : i32
    %c0_i32_0 = arith.constant 0 : i32
    %c0_i32_1 = arith.constant 0 : i32
    return %c0_i32, %c0_i32_0 : i32, i32
  }
  func.func @transform_7(%arg0: i32, %arg1: i32) -> (i32, i32) {
    %c0_i32 = arith.constant 0 : i32
    %c0_i32_0 = arith.constant 0 : i32
    %c0_i32_1 = arith.constant 0 : i32
    return %c0_i32, %c0_i32_0 : i32, i32
  }
  func.func @transform_8(%arg0: i32, %arg1: i32) -> (i32, i32) {
    %c0_i32 = arith.constant 0 : i32
    %c0_i32_0 = arith.constant 0 : i32
    %c0_i32_1 = arith.constant 0 : i32
    return %c0_i32, %c0_i32_0 : i32, i32
  }
  func.func @transform_9(%arg0: i32, %arg1: i32) -> (i32, i32) {
    %c0_i32 = arith.constant 0 : i32
    %c0_i32_0 = arith.constant 0 : i32
    %c0_i32_1 = arith.constant 0 : i32
    return %c0_i32, %c0_i32_0 : i32, i32
  }
  func.func @transform_10(%arg0: i32, %arg1: i32) -> (i32, i32) {
    %c0_i32 = arith.constant 0 : i32
    %c0_i32_0 = arith.constant 0 : i32
    %c0_i32_1 = arith.constant 0 : i32
    return %c0_i32, %c0_i32_0 : i32, i32
  }
  func.func @transform_11(%arg0: i32, %arg1: i32) -> (i32, i32) {
    %c0_i32 = arith.constant 0 : i32
    %c0_i32_0 = arith.constant 0 : i32
    return %arg0, %c0_i32 : i32, i32
  }
  func.func @transform_12(%arg0: i32, %arg1: i32) -> (i32, i32) {
    %c0_i32 = arith.constant 0 : i32
    %c0_i32_0 = arith.constant 0 : i32
    return %arg0, %c0_i32 : i32, i32
  }
  func.func @transform_13(%arg0: i32, %arg1: i32) -> (i32, i32) {
    %c0_i32 = arith.constant 0 : i32
    %c0_i32_0 = arith.constant 0 : i32
    return %arg0, %c0_i32 : i32, i32
  }
}

module attributes {stable_mosaic.version = 11 : i64} {
  func.func @deepdra_kernel(%arg0: i32, %arg1: i32, %arg2: memref<8x32xf32, #tpu.memory_space<vmem>>, %arg3: memref<8x24xf32, #tpu.memory_space<vmem>>, %arg4: memref<32x128xbf16, #tpu.memory_space<vmem>>, %arg5: memref<1x128xf32, #tpu.memory_space<vmem>>, %arg6: memref<24x128xbf16, #tpu.memory_space<vmem>>, %arg7: memref<1x128xf32, #tpu.memory_space<vmem>>, %arg8: memref<128x128xbf16, #tpu.memory_space<vmem>>, %arg9: memref<128x128xbf16, #tpu.memory_space<vmem>>, %arg10: memref<1x128xf32, #tpu.memory_space<vmem>>, %arg11: memref<128x128xbf16, #tpu.memory_space<vmem>>, %arg12: memref<1x128xf32, #tpu.memory_space<vmem>>, %arg13: memref<8x128xbf16, #tpu.memory_space<vmem>>, %arg14: memref<8x128xbf16, #tpu.memory_space<vmem>>, %arg15: memref<8x128xbf16, #tpu.memory_space<vmem>>, %arg16: memref<8x128xf32, #tpu.memory_space<vmem>>) attributes {dimension_semantics = [#tpu.dimension_semantics<parallel>, #tpu.dimension_semantics<arbitrary>], iteration_bounds = array<i64: 1, 1>, scalar_prefetch = 0 : i64, scratch_operands = 1 : i64, tpu.core_type = #tpu.core_type<tc>, window_params = [{transform_indices = @transform_0, window_bounds = array<i64: 8, 32>}, {transform_indices = @transform_1, window_bounds = array<i64: 8, 24>}, {transform_indices = @transform_2, window_bounds = array<i64: 32, 128>}, {pipeline_mode = #tpu.pipeline_mode<synchronous>, transform_indices = @transform_3, window_bounds = array<i64: 1, 128>}, {pipeline_mode = #tpu.pipeline_mode<synchronous>, transform_indices = @transform_4, window_bounds = array<i64: 24, 128>}, {pipeline_mode = #tpu.pipeline_mode<synchronous>, transform_indices = @transform_5, window_bounds = array<i64: 1, 128>}, {pipeline_mode = #tpu.pipeline_mode<synchronous>, transform_indices = @transform_6, window_bounds = array<i64: 128, 128>}, {pipeline_mode = #tpu.pipeline_mode<synchronous>, transform_indices = @transform_7, window_bounds = array<i64: 128, 128>}, {pipeline_mode = #tpu.pipeline_mode<synchronous>, transform_indices = @transform_8, window_bounds = array<i64: 1, 128>}, {pipeline_mode = #tpu.pipeline_mode<synchronous>, transform_indices = @transform_9, window_bounds = array<i64: 128, 128>}, {pipeline_mode = #tpu.pipeline_mode<synchronous>, transform_indices = @transform_10, window_bounds = array<i64: 1, 128>}, {transform_indices = @transform_11, window_bounds = array<i64: 8, 128>}, {transform_indices = @transform_12, window_bounds = array<i64: 8, 128>}, {transform_indices = @transform_13, window_bounds = array<i64: 8, 128>}]} {
    %c0_i32 = arith.constant 0 : i32
    %0 = arith.cmpi eq, %arg1, %c0_i32 : i32
    %1 = arith.extui %0 : i1 to i32
    %c0_i32_0 = arith.constant 0 : i32
    %2 = arith.cmpi ne, %1, %c0_i32_0 : i32
    scf.if %2 {
      %cst_10 = arith.constant 0.000000e+00 : f32
      %13 = vector.broadcast %cst_10 : f32 to vector<8x128xf32>
      %c0_11 = arith.constant 0 : index
      %c0_12 = arith.constant 0 : index
      %14 = vector.load %arg16[%c0_11, %c0_12] : memref<8x128xf32, #tpu.memory_space<vmem>>, vector<8x128xf32>
      tpu.vector_store %arg16[%c0_11, %c0_12], %13 {strides = array<i32>} : memref<8x128xf32, #tpu.memory_space<vmem>>, vector<8x128xf32>,
    } else {
    }
    %c0 = arith.constant 0 : index
    %c0_1 = arith.constant 0 : index
    %3 = vector.load %arg16[%c0, %c0_1] : memref<8x128xf32, #tpu.memory_space<vmem>>, vector<8x128xf32>
    %c0_2 = arith.constant 0 : index
    %c0_3 = arith.constant 0 : index
    %4 = vector.load %arg2[%c0_2, %c0_3] : memref<8x32xf32, #tpu.memory_space<vmem>>, vector<8x32xf32>
    %5 = arith.truncf %4 : vector<8x32xf32> to vector<8x32xbf16>
    %c0_4 = arith.constant 0 : index
    %c0_5 = arith.constant 0 : index
    %6 = vector.load %arg4[%c0_4, %c0_5] : memref<32x128xbf16, #tpu.memory_space<vmem>>, vector<32x128xbf16>
    %cst = arith.constant dense<0.000000e+00> : vector<8x128xf32>
    %7 = tpu.matmul %5, %6, %cst {dimension_numbers = #tpu.dot_dimension_numbers<[1], [0], [0], [1], [0, 0, 1, 1], [], []>} : vector<8x32xbf16>, vector<32x128xbf16>, vector<8x128xf32> -> vector<8x128xf32>
    %8 = arith.addf %3, %7 : vector<8x128xf32>
    %c0_6 = arith.constant 0 : index
    %c0_7 = arith.constant 0 : index
    %9 = vector.load %arg16[%c0_6, %c0_7] : memref<8x128xf32, #tpu.memory_space<vmem>>, vector<8x128xf32>
    tpu.vector_store %arg16[%c0_6, %c0_7], %8 {strides = array<i32>} : memref<8x128xf32, #tpu.memory_space<vmem>>, vector<8x128xf32>,
    %c0_i32_8 = arith.constant 0 : i32
    %10 = arith.cmpi eq, %arg1, %c0_i32_8 : i32
    %11 = arith.extui %10 : i1 to i32
    %c0_i32_9 = arith.constant 0 : i32
    %12 = arith.cmpi ne, %11, %c0_i32_9 : i32
    scf.if %12 {
      %c0_10 = arith.constant 0 : index
      %c0_11 = arith.constant 0 : index
      %13 = vector.load %arg16[%c0_10, %c0_11] : memref<8x128xf32, #tpu.memory_space<vmem>>, vector<8x128xf32>
      %c0_12 = arith.constant 0 : index
      %c0_13 = arith.constant 0 : index
      %14 = vector.load %arg5[%c0_12, %c0_13] : memref<1x128xf32, #tpu.memory_space<vmem>>, vector<1x128xf32>
      %15 = vector.broadcast %14 : vector<1x128xf32> to vector<8x128xf32>
      %16 = arith.addf %13, %15 : vector<8x128xf32>
      %c0_14 = arith.constant 0 : index
      %c0_15 = arith.constant 0 : index
      %17 = vector.load %arg3[%c0_14, %c0_15] : memref<8x24xf32, #tpu.memory_space<vmem>>, vector<8x24xf32>
      %18 = arith.truncf %17 : vector<8x24xf32> to vector<8x24xbf16>
      %c0_16 = arith.constant 0 : index
      %c0_17 = arith.constant 0 : index
      %19 = vector.load %arg6[%c0_16, %c0_17] : memref<24x128xbf16, #tpu.memory_space<vmem>>, vector<24x128xbf16>
      %cst_18 = arith.constant dense<0.000000e+00> : vector<8x128xf32>
      %20 = tpu.matmul %18, %19, %cst_18 {dimension_numbers = #tpu.dot_dimension_numbers<[1], [0], [0], [1], [0, 0, 1, 1], [], []>} : vector<8x24xbf16>, vector<24x128xbf16>, vector<8x128xf32> -> vector<8x128xf32>
      %c0_19 = arith.constant 0 : index
      %c0_20 = arith.constant 0 : index
      %21 = vector.load %arg7[%c0_19, %c0_20] : memref<1x128xf32, #tpu.memory_space<vmem>>, vector<1x128xf32>
      %22 = vector.broadcast %21 : vector<1x128xf32> to vector<8x128xf32>
      %23 = arith.addf %20, %22 : vector<8x128xf32>
      %24 = arith.truncf %16 : vector<8x128xf32> to vector<8x128xbf16>
      %c0_21 = arith.constant 0 : index
      %c0_22 = arith.constant 0 : index
      %25 = vector.load %arg14[%c0_21, %c0_22] : memref<8x128xbf16, #tpu.memory_space<vmem>>, vector<8x128xbf16>
      tpu.vector_store %arg14[%c0_21, %c0_22], %24 {strides = array<i32>} : memref<8x128xbf16, #tpu.memory_space<vmem>>, vector<8x128xbf16>,
      %26 = arith.truncf %23 : vector<8x128xf32> to vector<8x128xbf16>
      %c0_23 = arith.constant 0 : index
      %c0_24 = arith.constant 0 : index
      %27 = vector.load %arg15[%c0_23, %c0_24] : memref<8x128xbf16, #tpu.memory_space<vmem>>, vector<8x128xbf16>
      tpu.vector_store %arg15[%c0_23, %c0_24], %26 {strides = array<i32>} : memref<8x128xbf16, #tpu.memory_space<vmem>>, vector<8x128xbf16>,
      %28 = arith.truncf %16 : vector<8x128xf32> to vector<8x128xbf16>
      %c0_25 = arith.constant 0 : index
      %c0_26 = arith.constant 0 : index
      %29 = vector.load %arg8[%c0_25, %c0_26] : memref<128x128xbf16, #tpu.memory_space<vmem>>, vector<128x128xbf16>
      %cst_27 = arith.constant dense<0.000000e+00> : vector<8x128xf32>
      %30 = tpu.matmul %28, %29, %cst_27 {dimension_numbers = #tpu.dot_dimension_numbers<[1], [0], [0], [1], [0, 0, 1, 1], [], []>} : vector<8x128xbf16>, vector<128x128xbf16>, vector<8x128xf32> -> vector<8x128xf32>
      %31 = arith.truncf %23 : vector<8x128xf32> to vector<8x128xbf16>
      %c0_28 = arith.constant 0 : index
      %c0_29 = arith.constant 0 : index
      %32 = vector.load %arg9[%c0_28, %c0_29] : memref<128x128xbf16, #tpu.memory_space<vmem>>, vector<128x128xbf16>
      %cst_30 = arith.constant dense<0.000000e+00> : vector<8x128xf32>
      %33 = tpu.matmul %31, %32, %cst_30 {dimension_numbers = #tpu.dot_dimension_numbers<[1], [0], [0], [1], [0, 0, 1, 1], [], []>} : vector<8x128xbf16>, vector<128x128xbf16>, vector<8x128xf32> -> vector<8x128xf32>
      %34 = arith.addf %30, %33 : vector<8x128xf32>
      %c0_31 = arith.constant 0 : index
      %c0_32 = arith.constant 0 : index
      %35 = vector.load %arg10[%c0_31, %c0_32] : memref<1x128xf32, #tpu.memory_space<vmem>>, vector<1x128xf32>
      %36 = vector.broadcast %35 : vector<1x128xf32> to vector<8x128xf32>
      %37 = arith.addf %34, %36 : vector<8x128xf32>
      %cst_33 = arith.constant 0.000000e+00 : f32
      %38 = vector.broadcast %cst_33 : f32 to vector<8x128xf32>
      %39 = arith.maximumf %37, %38 : vector<8x128xf32>
      %40 = arith.truncf %39 : vector<8x128xf32> to vector<8x128xbf16>
      %c0_34 = arith.constant 0 : index
      %c0_35 = arith.constant 0 : index
      %41 = vector.load %arg11[%c0_34, %c0_35] : memref<128x128xbf16, #tpu.memory_space<vmem>>, vector<128x128xbf16>
      %cst_36 = arith.constant dense<0.000000e+00> : vector<8x128xf32>
      %42 = tpu.matmul %40, %41, %cst_36 {dimension_numbers = #tpu.dot_dimension_numbers<[1], [0], [0], [1], [0, 0, 1, 1], [], []>} : vector<8x128xbf16>, vector<128x128xbf16>, vector<8x128xf32> -> vector<8x128xf32>
      %c0_37 = arith.constant 0 : index
      %c0_38 = arith.constant 0 : index
      %43 = vector.load %arg12[%c0_37, %c0_38] : memref<1x128xf32, #tpu.memory_space<vmem>>, vector<1x128xf32>
      %44 = vector.broadcast %43 : vector<1x128xf32> to vector<8x128xf32>
      %45 = arith.addf %42, %44 : vector<8x128xf32>
      %46 = arith.negf %45 : vector<8x128xf32>
      %47 = math.exp %46 : vector<8x128xf32>
      %cst_39 = arith.constant 1.000000e+00 : f32
      %48 = vector.broadcast %cst_39 : f32 to vector<8x128xf32>
      %49 = arith.addf %48, %47 : vector<8x128xf32>
      %50 = arith.divf %48, %49 : vector<8x128xf32>
      %51 = arith.truncf %50 : vector<8x128xf32> to vector<8x128xbf16>
      %c0_40 = arith.constant 0 : index
      %c0_41 = arith.constant 0 : index
      %52 = vector.load %arg13[%c0_40, %c0_41] : memref<8x128xbf16, #tpu.memory_space<vmem>>, vector<8x128xbf16>
      tpu.vector_store %arg13[%c0_40, %c0_41], %51 {strides = array<i32>} : memref<8x128xbf16, #tpu.memory_space<vmem>>, vector<8x128xbf16>,
    } else {
    }
    return
  }
  func.func @transform_0(%arg0: i32, %arg1: i32) -> (i32, i32) {
    %c0_i32 = arith.constant 0 : i32
    return %arg0, %arg1 : i32, i32
  }
  func.func @transform_1(%arg0: i32, %arg1: i32) -> (i32, i32) {
    %c0_i32 = arith.constant 0 : i32
    %c0_i32_0 = arith.constant 0 : i32
    return %arg0, %c0_i32 : i32, i32
  }
  func.func @transform_2(%arg0: i32, %arg1: i32) -> (i32, i32) {
    %c0_i32 = arith.constant 0 : i32
    %c0_i32_0 = arith.constant 0 : i32
    return %arg1, %c0_i32 : i32, i32
  }
  func.func @transform_3(%arg0: i32, %arg1: i32) -> (i32, i32) {
    %c0_i32 = arith.constant 0 : i32
    %c0_i32_0 = arith.constant 0 : i32
    %c0_i32_1 = arith.constant 0 : i32
    return %c0_i32, %c0_i32_0 : i32, i32
  }
  func.func @transform_4(%arg0: i32, %arg1: i32) -> (i32, i32) {
    %c0_i32 = arith.constant 0 : i32
    %c0_i32_0 = arith.constant 0 : i32
    %c0_i32_1 = arith.constant 0 : i32
    return %c0_i32, %c0_i32_0 : i32, i32
  }
  func.func @transform_5(%arg0: i32, %arg1: i32) -> (i32, i32) {
    %c0_i32 = arith.constant 0 : i32
    %c0_i32_0 = arith.constant 0 : i32
    %c0_i32_1 = arith.constant 0 : i32
    return %c0_i32, %c0_i32_0 : i32, i32
  }
  func.func @transform_6(%arg0: i32, %arg1: i32) -> (i32, i32) {
    %c0_i32 = arith.constant 0 : i32
    %c0_i32_0 = arith.constant 0 : i32
    %c0_i32_1 = arith.constant 0 : i32
    return %c0_i32, %c0_i32_0 : i32, i32
  }
  func.func @transform_7(%arg0: i32, %arg1: i32) -> (i32, i32) {
    %c0_i32 = arith.constant 0 : i32
    %c0_i32_0 = arith.constant 0 : i32
    %c0_i32_1 = arith.constant 0 : i32
    return %c0_i32, %c0_i32_0 : i32, i32
  }
  func.func @transform_8(%arg0: i32, %arg1: i32) -> (i32, i32) {
    %c0_i32 = arith.constant 0 : i32
    %c0_i32_0 = arith.constant 0 : i32
    %c0_i32_1 = arith.constant 0 : i32
    return %c0_i32, %c0_i32_0 : i32, i32
  }
  func.func @transform_9(%arg0: i32, %arg1: i32) -> (i32, i32) {
    %c0_i32 = arith.constant 0 : i32
    %c0_i32_0 = arith.constant 0 : i32
    %c0_i32_1 = arith.constant 0 : i32
    return %c0_i32, %c0_i32_0 : i32, i32
  }
  func.func @transform_10(%arg0: i32, %arg1: i32) -> (i32, i32) {
    %c0_i32 = arith.constant 0 : i32
    %c0_i32_0 = arith.constant 0 : i32
    %c0_i32_1 = arith.constant 0 : i32
    return %c0_i32, %c0_i32_0 : i32, i32
  }
  func.func @transform_11(%arg0: i32, %arg1: i32) -> (i32, i32) {
    %c0_i32 = arith.constant 0 : i32
    %c0_i32_0 = arith.constant 0 : i32
    return %arg0, %c0_i32 : i32, i32
  }
  func.func @transform_12(%arg0: i32, %arg1: i32) -> (i32, i32) {
    %c0_i32 = arith.constant 0 : i32
    %c0_i32_0 = arith.constant 0 : i32
    return %arg0, %c0_i32 : i32, i32
  }
  func.func @transform_13(%arg0: i32, %arg1: i32) -> (i32, i32) {
    %c0_i32 = arith.constant 0 : i32
    %c0_i32_0 = arith.constant 0 : i32
    return %arg0, %c0_i32 : i32, i32
  }
}

</mosaic_0001>

<llo_original>
// kernel: tpu_custom_call.1
$region0: #{tpu_custom_call.1}
  #allocation0 [shape = 'u32[]', space=smem, size = 0x4, offset = 0x4, fixed_abs, tag = 'smem constant byte address 0x4 - core index']
  #allocation1 [shape = 'u32[72,128]{1,0:T(1,128)}', space=vmem, size = 0x9000, scoped, tag = 'internal scratch']
  #allocation2 [shape = 'f32[8,128]{1,0:T(8,128)}', space=vmem, size = 0x1000, scoped, tag = 'scratch operand']
  %s0 = inlined_call_operand.hbm [shape: f32[8,32], index: 0, kind: input, shape index: {}]
  %s1 = inlined_call_operand.hbm [shape: f32[8,24], index: 1, kind: input, shape index: {}]
  %s2 = inlined_call_operand.hbm [shape: bf16[32,128], index: 2, kind: input, shape index: {}]
  %s3 = inlined_call_operand.vmem [shape: f32[1,128], index: 3, kind: input, shape index: {}]
  %s4 = inlined_call_operand.hbm [shape: bf16[24,128], index: 4, kind: input, shape index: {}]
  %s5 = inlined_call_operand.vmem [shape: f32[1,128], index: 5, kind: input, shape index: {}]
  %s6 = inlined_call_operand.hbm [shape: bf16[128,128], index: 6, kind: input, shape index: {}]
  %s7 = inlined_call_operand.hbm [shape: bf16[128,128], index: 7, kind: input, shape index: {}]
  %s8 = inlined_call_operand.vmem [shape: f32[1,128], index: 8, kind: input, shape index: {}]
  %s9 = inlined_call_operand.hbm [shape: bf16[128,128], index: 9, kind: input, shape index: {}]
  %s10 = inlined_call_operand.vmem [shape: f32[1,128], index: 10, kind: input, shape index: {}]
  %s11 = inlined_call_operand.hbm [shape: bf16[8,128], index: 11, kind: output, shape index: {0}]
  %s12 = inlined_call_operand.hbm [shape: bf16[8,128], index: 12, kind: output, shape index: {1}]
  %s13 = inlined_call_operand.hbm [shape: bf16[8,128], index: 13, kind: output, shape index: {2}]
  %14 = xla_tuple %s11, %s12, %s13
  %s15 = sld [smem:[#allocation0]]
  $region106: #{tpu_custom_call.1} parent=0
    _
  %s17 = ssub.s32 1, %s15
  %s18 = scalar_select 0, %s17, %s15
  $region1: #{tpu_custom_call.1} parent=0
    #allocation3 [shape = 'u8[4096]{0}', space=vmem, size = 0x1000, scoped, tag = 'input window, operand 0, single buffered']
    #allocation4 [shape = 's32[1]{0}', space=sflag, size = 0x4, scoped, tag = 'scoped memory for tpu_custom_call.1']
    #allocation5 [shape = 's32[1]{0}', space=sflag, size = 0x4, scoped, tag = 'scoped memory for tpu_custom_call.1']
    #allocation6 [shape = 'u8[4096]{0}', space=vmem, size = 0x1000, scoped, tag = 'input window, operand 1, single buffered']
    #allocation7 [shape = 's32[1]{0}', space=sflag, size = 0x4, scoped, tag = 'scoped memory for tpu_custom_call.1']
    #allocation8 [shape = 'u8[8192]{0}', space=vmem, size = 0x2000, scoped, tag = 'input window, operand 2, single buffered']
    #allocation9 [shape = 'u8[6144]{0}', space=vmem, size = 0x1800, scoped, tag = 'input window, operand 4, single buffered']
    #allocation10 [shape = 's32[1]{0}', space=sflag, size = 0x4, scoped, tag = 'scoped memory for tpu_custom_call.1']
    #allocation11 [shape = 'u8[32768]{0}', space=vmem, size = 0x8000, scoped, tag = 'input window, operand 6, single buffered']
    #allocation12 [shape = 'u8[32768]{0}', space=vmem, size = 0x8000, scoped, tag = 'input window, operand 7, single buffered']
    #allocation13 [shape = 's32[1]{0}', space=sflag, size = 0x4, scoped, tag = 'scoped memory for tpu_custom_call.1']
    #allocation14 [shape = 'u8[32768]{0}', space=vmem, size = 0x8000, scoped, tag = 'input window, operand 9, single buffered']
    #allocation15 [shape = 'u8[2048]{0}', space=vmem, size = 0x800, scoped, tag = 'output window, operand 0, single buffered']
    #allocation16 [shape = 'u8[2048]{0}', space=vmem, size = 0x800, scoped, tag = 'output window, operand 1, single buffered']
    #allocation17 [shape = 's32[1]{0}', space=sflag, size = 0x4, scoped, tag = 'scoped memory for tpu_custom_call.1']
    #allocation18 [shape = 'u8[2048]{0}', space=vmem, size = 0x800, scoped, tag = 'output window, operand 2, single buffered']
    %19 = vsyncpa [#allocation4], 0
    %20 = vsyncpa [#allocation7], 0
    %21 = vsyncpa [#allocation10], 0
    %22 = vsyncpa [#allocation13], 0
    %23 = vsyncpa [#allocation5], 0
    %24 = vsyncpa [#allocation17], 0
    // Predicated region
    $region2: #{tpu_custom_call.1} parent=1 // pred_check
      _
    $region3: #{tpu_custom_call.1} parent=1 // pred_check_branch
      %26 = sbr.rel (0) target = $region5
    $region4: #{tpu_custom_call.1} parent=1 // pred_region
      %28 = vsyncadd [#allocation4], 0
      %s30 = sshll.u32 %s0, 4
      %s31 = int_to_ptr.hbm [resolvable:$true] %s30
      %s32 = sshll.u32 [#allocation3], 4
      %s33 = int_to_ptr.vmem [resolvable:$true] %s32
      %35 = dma.hbm_to_vmem [thread:$0]  %s31, 128, %s33, [#allocation4]
    $region5: #{tpu_custom_call.1} parent=1 // pred_fallthru
      _
    // Predicated region
    $region6: #{tpu_custom_call.1} parent=1 // pred_check
      _
    $region7: #{tpu_custom_call.1} parent=1 // pred_check_branch
      %37 = sbr.rel (0) target = $region9
    $region8: #{tpu_custom_call.1} parent=1 // pred_region
      %39 = vsyncadd [#allocation7], 0
      %s41 = sshll.u32 %s1, 4
      %s42 = int_to_ptr.hbm [resolvable:$true] %s41
      %s43 = sshll.u32 [#allocation6], 4
      %s44 = int_to_ptr.vmem [resolvable:$true] %s43
      %46 = dma.hbm_to_vmem [thread:$0]  %s42, 128, %s44, [#allocation7]
    $region9: #{tpu_custom_call.1} parent=1 // pred_fallthru
      _
    // Predicated region
    $region10: #{tpu_custom_call.1} parent=1 // pred_check
      _
    $region11: #{tpu_custom_call.1} parent=1 // pred_check_branch
      %48 = sbr.rel (0) target = $region13
    $region12: #{tpu_custom_call.1} parent=1 // pred_region
      %50 = vsyncadd [#allocation7], 0
      %s51 = sshll.u32 %s2, 4
      %s52 = int_to_ptr.hbm [resolvable:$true] %s51
      %s53 = sshll.u32 [#allocation8], 4
      %s54 = int_to_ptr.vmem [resolvable:$true] %s53
      %59 = dma.hbm_to_vmem [thread:$0]  %s52, 256, %s54, [#allocation7], 64, 64, 4
    $region13: #{tpu_custom_call.1} parent=1 // pred_fallthru
      _
    // Predicated region
    $region14: #{tpu_custom_call.1} parent=1 // pred_check
      _
    $region15: #{tpu_custom_call.1} parent=1 // pred_check_branch
      %61 = sbr.rel (0) target = $region17
    $region16: #{tpu_custom_call.1} parent=1 // pred_region
      _
    $region17: #{tpu_custom_call.1} parent=1 // pred_fallthru
      _
    // Predicated region
    $region18: #{tpu_custom_call.1} parent=1 // pred_check
      _
    $region19: #{tpu_custom_call.1} parent=1 // pred_check_branch
      %63 = sbr.rel (0) target = $region21
    $region20: #{tpu_custom_call.1} parent=1 // pred_region
      %65 = vsyncadd [#allocation10], 0
      %s66 = sshll.u32 %s4, 4
      %s67 = int_to_ptr.hbm [resolvable:$true] %s66
      %s68 = sshll.u32 [#allocation9], 4
      %s69 = int_to_ptr.vmem [resolvable:$true] %s68
      %74 = dma.hbm_to_vmem [thread:$0]  %s67, 192, %s69, [#allocation10], 64, 64, 4
    $region21: #{tpu_custom_call.1} parent=1 // pred_fallthru
      _
    // Predicated region
    $region22: #{tpu_custom_call.1} parent=1 // pred_check
      _
    $region23: #{tpu_custom_call.1} parent=1 // pred_check_branch
      %76 = sbr.rel (0) target = $region25
    $region24: #{tpu_custom_call.1} parent=1 // pred_region
      _
    $region25: #{tpu_custom_call.1} parent=1 // pred_fallthru
      _
    // Predicated region
    $region26: #{tpu_custom_call.1} parent=1 // pred_check
      _
    $region27: #{tpu_custom_call.1} parent=1 // pred_check_branch
      %78 = sbr.rel (0) target = $region29
    $region28: #{tpu_custom_call.1} parent=1 // pred_region
      %80 = vsyncadd [#allocation10], 0
      %s81 = sshll.u32 %s6, 4
      %s82 = int_to_ptr.hbm [resolvable:$true] %s81
      %s83 = sshll.u32 [#allocation11], 4
      %s84 = int_to_ptr.vmem [resolvable:$true] %s83
      %89 = dma.hbm_to_vmem [thread:$0]  %s82, 1024, %s84, [#allocation10], 64, 64, 4
    $region29: #{tpu_custom_call.1} parent=1 // pred_fallthru
      _
    // Predicated region
    $region30: #{tpu_custom_call.1} parent=1 // pred_check
      _
    $region31: #{tpu_custom_call.1} parent=1 // pred_check_branch
      %91 = sbr.rel (0) target = $region33
    $region32: #{tpu_custom_call.1} parent=1 // pred_region
      %93 = vsyncadd [#allocation13], 0
      %s94 = sshll.u32 %s7, 4
      %s95 = int_to_ptr.hbm [resolvable:$true] %s94
      %s96 = sshll.u32 [#allocation12], 4
      %s97 = int_to_ptr.vmem [resolvable:$true] %s96
      %102 = dma.hbm_to_vmem [thread:$0]  %s95, 1024, %s97, [#allocation13], 64, 64, 4
    $region33: #{tpu_custom_call.1} parent=1 // pred_fallthru
      _
    // Predicated region
    $region34: #{tpu_custom_call.1} parent=1 // pred_check
      _
    $region35: #{tpu_custom_call.1} parent=1 // pred_check_branch
      %104 = sbr.rel (0) target = $region37
    $region36: #{tpu_custom_call.1} parent=1 // pred_region
      _
    $region37: #{tpu_custom_call.1} parent=1 // pred_fallthru
      _
    // Predicated region
    $region38: #{tpu_custom_call.1} parent=1 // pred_check
      _
    $region39: #{tpu_custom_call.1} parent=1 // pred_check_branch
      %106 = sbr.rel (0) target = $region41
    $region40: #{tpu_custom_call.1} parent=1 // pred_region
      %108 = vsyncadd [#allocation13], 0
      %s109 = sshll.u32 %s9, 4
      %s110 = int_to_ptr.hbm [resolvable:$true] %s109
      %s111 = sshll.u32 [#allocation14], 4
      %s112 = int_to_ptr.vmem [resolvable:$true] %s111
      %117 = dma.hbm_to_vmem [thread:$0]  %s110, 1024, %s112, [#allocation13], 64, 64, 4
    $region41: #{tpu_custom_call.1} parent=1 // pred_fallthru
      _
    // Predicated region
    $region42: #{tpu_custom_call.1} parent=1 // pred_check
      _
    $region43: #{tpu_custom_call.1} parent=1 // pred_check_branch
      %119 = sbr.rel (0) target = $region45
    $region44: #{tpu_custom_call.1} parent=1 // pred_region
      _
    $region45: #{tpu_custom_call.1} parent=1 // pred_fallthru
      _
    // Predicated region
    $region46: #{tpu_custom_call.1} parent=1 // pred_check
      _
    $region47: #{tpu_custom_call.1} parent=1 // pred_check_branch
      %121 = sbr.rel (0) target = $region49
    $region48: #{tpu_custom_call.1} parent=1 // pred_region
      %123 = dma.done [#allocation4], 128
    $region49: #{tpu_custom_call.1} parent=1 // pred_fallthru
      _
    // Predicated region
    $region50: #{tpu_custom_call.1} parent=1 // pred_check
      _
    $region51: #{tpu_custom_call.1} parent=1 // pred_check_branch
      %125 = sbr.rel (0) target = $region53
    $region52: #{tpu_custom_call.1} parent=1 // pred_region
      %127 = dma.done [#allocation7], 128
    $region53: #{tpu_custom_call.1} parent=1 // pred_fallthru
      _
    // Predicated region
    $region54: #{tpu_custom_call.1} parent=1 // pred_check
      _
    $region55: #{tpu_custom_call.1} parent=1 // pred_check_branch
      %129 = sbr.rel (0) target = $region57
    $region56: #{tpu_custom_call.1} parent=1 // pred_region
      %131 = dma.done [#allocation7], 256
    $region57: #{tpu_custom_call.1} parent=1 // pred_fallthru
      _
    // Predicated region
    $region58: #{tpu_custom_call.1} parent=1 // pred_check
      _
    $region59: #{tpu_custom_call.1} parent=1 // pred_check_branch
      %133 = sbr.rel (0) target = $region61
    $region60: #{tpu_custom_call.1} parent=1 // pred_region
      %135 = dma.done [#allocation10], 192
    $region61: #{tpu_custom_call.1} parent=1 // pred_fallthru
      _
    // Predicated region
    $region62: #{tpu_custom_call.1} parent=1 // pred_check
      _
    $region63: #{tpu_custom_call.1} parent=1 // pred_check_branch
      %137 = sbr.rel (0) target = $region65
    $region64: #{tpu_custom_call.1} parent=1 // pred_region
      %139 = dma.done [#allocation10], 1024
    $region65: #{tpu_custom_call.1} parent=1 // pred_fallthru
      _
    // Predicated region
    $region66: #{tpu_custom_call.1} parent=1 // pred_check
      _
    $region67: #{tpu_custom_call.1} parent=1 // pred_check_branch
      %141 = sbr.rel (0) target = $region69
    $region68: #{tpu_custom_call.1} parent=1 // pred_region
      %143 = dma.done [#allocation13], 1024
    $region69: #{tpu_custom_call.1} parent=1 // pred_fallthru
      _
    // Predicated region
    $region70: #{tpu_custom_call.1} parent=1 // pred_check
      _
    $region71: #{tpu_custom_call.1} parent=1 // pred_check_branch
      %145 = sbr.rel (0) target = $region73
    $region72: #{tpu_custom_call.1} parent=1 // pred_region
      %147 = dma.done [#allocation13], 1024
    $region73: #{tpu_custom_call.1} parent=1 // pred_fallthru
      _
    %p149 = scmp.eq.s32.totalorder 0, 0
    // Predicated region
    $region74: #{tpu_custom_call.1} parent=1 // pred_check
      %p150 = pneg %p149
    $region75: #{tpu_custom_call.1} parent=1 // pred_check_branch
      %152 = sbr.rel (%p150) target = $region77
    $region76: #{tpu_custom_call.1} parent=1 // pred_region
      %153 = vst [vmem:[#allocation2] sm:$0xff] 0.0
    $region77: #{tpu_custom_call.1} parent=1 // pred_fallthru
      _
    %v154 = vld [vmem:[#allocation2] sm:$0xff]
    %v155 = vld [vmem:[#allocation3] sm:$0xff]
    %v156 = vpack.c.bf16 %v155, %v155
    %v157 = vld [vmem:[#allocation8] sm:$0xf]
    %v158 = vld [vmem:[#allocation8 + $0x4] sm:$0xf]
    %v159 = vld [vmem:[#allocation8 + $0x8] sm:$0xf]
    %v160 = vld [vmem:[#allocation8 + $0xc] sm:$0xf]
    %v165 = vunpack.c.l.b16 %v157
    %v166 = vunpack.c.l.b16 %v158
    %v167 = vunpack.c.l.b16 %v159
    %v168 = vunpack.c.l.b16 %v160
    %v169 = vpack.c.b16 %v166, %v165
    %v170 = vpack.c.b16 %v168, %v167
    %vm173 = vcmask 261120
    %v175 = vsel %vm173, %v156, 0
    %177 = vmatpush.bf16.msra.mxu0 0
    %178 = vmatpush.bf16.msra.mxu0 0
    %179 = vmatpush.bf16.msra.mxu0 0
    %180 = vmatpush.bf16.msra.mxu0 0
    %181 = vmatpush.bf16.msra.mxu0 0
    %182 = vmatpush.bf16.msra.mxu0 0
    %183 = vmatpush.bf16.msra.mxu0 %v170
    %184 = vmatpush.bf16.msra.mxu0 %v169
    %185 = vmatmul.bf16.gmra.mxu0 %v175
    %v186 = vpop.f32.mrf.mxu0
    %v187 = vadd.f32 0.0, %v186
    %v188 = vpop.f32.mrf.mxu0
    %189 = vdwg.mxu0
    %v190 = vadd.f32 %v154, %v187
    %191 = vst [vmem:[#allocation2] sm:$0xff] %v190
    // Predicated region
    $region78: #{tpu_custom_call.1} parent=1 // pred_check
      %p192 = pneg %p149
    $region79: #{tpu_custom_call.1} parent=1 // pred_check_branch
      %194 = sbr.rel (%p192) target = $region81
    $region80: #{tpu_custom_call.1} parent=1 // pred_region
      %v195 = vld [vmem:[#allocation2] sm:$0xff]
      %v196 = vld [vmem:[%s3] sm:$0x1]
      %v198 = vperm.slane %v196, 0
      %v200 = vadd.f32 %v195, %v198
      %v201 = vld [vmem:[#allocation6] sm:$0xff]
      %v202 = vpack.c.bf16 %v201, %v201
      %v203 = vld [vmem:[#allocation9] sm:$0xf]
      %v204 = vld [vmem:[#allocation9 + $0x4] sm:$0xf]
      %v205 = vld [vmem:[#allocation9 + $0x8] sm:$0xf]
      %v206 = vld [vmem:[%s5] sm:$0x1]
      %v208 = vperm.slane %v206, 0
      %v213 = vunpack.c.l.b16 %v203
      %v214 = vunpack.c.l.b16 %v204
      %v215 = vunpack.c.l.b16 %v205
      %v216 = vpack.c.b16 %v214, %v213
      %v217 = vpack.c.b16 %v215, %v215
      %vm219 = vcmask 195584
      %v221 = vsel %vm219, %v202, 0
      %vm223 = vcmask 1043456
      %v225 = vsel %vm223, %v217, 0
      %227 = vmatpush.bf16.msra.mxu0 0
      %228 = vmatpush.bf16.msra.mxu0 0
      %229 = vmatpush.bf16.msra.mxu0 0
      %230 = vmatpush.bf16.msra.mxu0 0
      %231 = vmatpush.bf16.msra.mxu0 0
      %232 = vmatpush.bf16.msra.mxu0 0
      %233 = vmatpush.bf16.msra.mxu0 %v225
      %234 = vmatpush.bf16.msra.mxu0 %v216
      %235 = vmatmul.bf16.gmra.mxu0 %v221
      %v236 = vpop.f32.mrf.mxu0
      %v237 = vadd.f32 %v208, %v236
      %v238 = vpop.f32.mrf.mxu0
      %239 = vdwg.mxu0
      %v240 = vpack.c.bf16 %v200, %v200
      %241 = vst [vmem:[#allocation16] sm:$0xf] %v240
      %v242 = vpack.c.bf16 %v237, %v237
      %243 = vst [vmem:[#allocation18] sm:$0xf] %v242
      %v244 = vld [vmem:[#allocation11] sm:$0xf]
      %v245 = vld [vmem:[#allocation11 + $0x4] sm:$0xf]
      %v246 = vld [vmem:[#allocation11 + $0x8] sm:$0xf]
      %v247 = vld [vmem:[#allocation11 + $0xc] sm:$0xf]
      %v248 = vld [vmem:[#allocation11 + $0x10] sm:$0xf]
      %v249 = vld [vmem:[#allocation11 + $0x14] sm:$0xf]
      %v250 = vld [vmem:[#allocation11 + $0x18] sm:$0xf]
      %v251 = vld [vmem:[#allocation11 + $0x1c] sm:$0xf]
      %v252 = vld [vmem:[#allocation11 + $0x20] sm:$0xf]
      %v253 = vld [vmem:[#allocation11 + $0x24] sm:$0xf]
      %v254 = vld [vmem:[#allocation11 + $0x28] sm:$0xf]
      %v255 = vld [vmem:[#allocation11 + $0x2c] sm:$0xf]
      %v256 = vld [vmem:[#allocation11 + $0x30] sm:$0xf]
      %v257 = vld [vmem:[#allocation11 + $0x34] sm:$0xf]
      %v258 = vld [vmem:[#allocation11 + $0x38] sm:$0xf]
      %v259 = vld [vmem:[#allocation11 + $0x3c] sm:$0xf]
      %v260 = vld [vmem:[#allocation12] sm:$0xf]
      %v261 = vld [vmem:[#allocation12 + $0x4] sm:$0xf]
      %v262 = vld [vmem:[#allocation12 + $0x8] sm:$0xf]
      %v263 = vld [vmem:[#allocation12 + $0xc] sm:$0xf]
      %v264 = vld [vmem:[#allocation12 + $0x10] sm:$0xf]
      %v265 = vld [vmem:[#allocation12 + $0x14] sm:$0xf]
      %v266 = vld [vmem:[#allocation12 + $0x18] sm:$0xf]
      %v267 = vld [vmem:[#allocation12 + $0x1c] sm:$0xf]
      %v268 = vld [vmem:[#allocation12 + $0x20] sm:$0xf]
      %v269 = vld [vmem:[#allocation12 + $0x24] sm:$0xf]
      %v270 = vld [vmem:[#allocation12 + $0x28] sm:$0xf]
      %v271 = vld [vmem:[#allocation12 + $0x2c] sm:$0xf]
      %v272 = vld [vmem:[#allocation12 + $0x30] sm:$0xf]
      %v273 = vld [vmem:[#allocation12 + $0x34] sm:$0xf]
      %v274 = vld [vmem:[#allocation12 + $0x38] sm:$0xf]
      %v275 = vld [vmem:[#allocation12 + $0x3c] sm:$0xf]
      %v292 = vunpack.c.l.b16 %v260
      %v293 = vunpack.c.l.b16 %v261
      %v294 = vunpack.c.l.b16 %v262
      %v295 = vunpack.c.l.b16 %v263
      %v296 = vunpack.c.l.b16 %v264
      %v297 = vunpack.c.l.b16 %v265
      %v298 = vunpack.c.l.b16 %v266
      %v299 = vunpack.c.l.b16 %v267
      %v300 = vunpack.c.l.b16 %v268
      %v301 = vunpack.c.l.b16 %v269
      %v302 = vunpack.c.l.b16 %v270
      %v303 = vunpack.c.l.b16 %v271
      %v304 = vunpack.c.l.b16 %v272
      %v305 = vunpack.c.l.b16 %v273
      %v306 = vunpack.c.l.b16 %v274
      %v307 = vunpack.c.l.b16 %v275
      %v308 = vpack.c.b16 %v293, %v292
      %v309 = vpack.c.b16 %v295, %v294
      %v310 = vpack.c.b16 %v297, %v296
      %v311 = vpack.c.b16 %v299, %v298
      %v312 = vpack.c.b16 %v301, %v300
      %v313 = vpack.c.b16 %v303, %v302
      %v314 = vpack.c.b16 %v305, %v304
      %v315 = vpack.c.b16 %v307, %v306
      %324 = vmatpush.bf16.msra.mxu0 %v315
      %325 = vmatpush.bf16.msra.mxu0 %v314
      %326 = vmatpush.bf16.msra.mxu0 %v313
      %327 = vmatpush.bf16.msra.mxu0 %v312
      %328 = vmatpush.bf16.msra.mxu0 %v311
      %329 = vmatpush.bf16.msra.mxu0 %v310
      %330 = vmatpush.bf16.msra.mxu0 %v309
      %331 = vmatpush.bf16.msra.mxu0 %v308
      %332 = vmatmul.bf16.gmra.mxu0 %v242
      %v333 = vpop.f32.mrf.mxu0
      %v334 = vadd.f32 0.0, %v333
      %v335 = vpop.f32.mrf.mxu0
      %336 = vdwg.mxu0
      %v353 = vunpack.c.l.b16 %v244
      %v354 = vunpack.c.l.b16 %v245
      %v355 = vunpack.c.l.b16 %v246
      %v356 = vunpack.c.l.b16 %v247
      %v357 = vunpack.c.l.b16 %v248
      %v358 = vunpack.c.l.b16 %v249
      %v359 = vunpack.c.l.b16 %v250
      %v360 = vunpack.c.l.b16 %v251
      %v361 = vunpack.c.l.b16 %v252
      %v362 = vunpack.c.l.b16 %v253
      %v363 = vunpack.c.l.b16 %v254
      %v364 = vunpack.c.l.b16 %v255
      %v365 = vunpack.c.l.b16 %v256
      %v366 = vunpack.c.l.b16 %v257
      %v367 = vunpack.c.l.b16 %v258
      %v368 = vunpack.c.l.b16 %v259
      %v369 = vpack.c.b16 %v354, %v353
      %v370 = vpack.c.b16 %v356, %v355
      %v371 = vpack.c.b16 %v358, %v357
      %v372 = vpack.c.b16 %v360, %v359
      %v373 = vpack.c.b16 %v362, %v361
      %v374 = vpack.c.b16 %v364, %v363
      %v375 = vpack.c.b16 %v366, %v365
      %v376 = vpack.c.b16 %v368, %v367
      %385 = vmatpush.bf16.msra.mxu0 %v376
      %386 = vmatpush.bf16.msra.mxu0 %v375
      %387 = vmatpush.bf16.msra.mxu0 %v374
      %388 = vmatpush.bf16.msra.mxu0 %v373
      %389 = vmatpush.bf16.msra.mxu0 %v372
      %390 = vmatpush.bf16.msra.mxu0 %v371
      %391 = vmatpush.bf16.msra.mxu0 %v370
      %392 = vmatpush.bf16.msra.mxu0 %v369
      %393 = vmatmul.bf16.gmra.mxu0 %v240
      %v394 = vpop.f32.mrf.mxu0
      %v395 = vadd.f32 %v334, %v394
      %v396 = vpop.f32.mrf.mxu0
      %397 = vdwg.mxu0
      %v398 = vld [vmem:[%s8] sm:$0x1]
      %v400 = vperm.slane %v398, 0
      %v402 = vadd.f32 %v395, %v400
      %v403 = vmax.f32 %v402, 0.0
      %v404 = vpack.c.bf16 %v403, %v403
      %v405 = vld [vmem:[#allocation14] sm:$0xf]
      %v406 = vld [vmem:[#allocation14 + $0x4] sm:$0xf]
      %v407 = vld [vmem:[#allocation14 + $0x8] sm:$0xf]
      %v408 = vld [vmem:[#allocation14 + $0xc] sm:$0xf]
      %v409 = vld [vmem:[#allocation14 + $0x10] sm:$0xf]
      %v410 = vld [vmem:[#allocation14 + $0x14] sm:$0xf]
      %v411 = vld [vmem:[#allocation14 + $0x18] sm:$0xf]
      %v412 = vld [vmem:[#allocation14 + $0x1c] sm:$0xf]
      %v413 = vld [vmem:[#allocation14 + $0x20] sm:$0xf]
      %v414 = vld [vmem:[#allocation14 + $0x24] sm:$0xf]
      %v415 = vld [vmem:[#allocation14 + $0x28] sm:$0xf]
      %v416 = vld [vmem:[#allocation14 + $0x2c] sm:$0xf]
      %v417 = vld [vmem:[#allocation14 + $0x30] sm:$0xf]
      %v418 = vld [vmem:[#allocation14 + $0x34] sm:$0xf]
      %v419 = vld [vmem:[#allocation14 + $0x38] sm:$0xf]
      %v420 = vld [vmem:[#allocation14 + $0x3c] sm:$0xf]
      %v421 = vld [vmem:[%s10] sm:$0x1]
      %v423 = vperm.slane %v421, 0
      %v441 = vunpack.c.l.b16 %v405
      %v442 = vunpack.c.l.b16 %v406
      %v443 = vunpack.c.l.b16 %v407
      %v444 = vunpack.c.l.b16 %v408
      %v445 = vunpack.c.l.b16 %v409
      %v446 = vunpack.c.l.b16 %v410
      %v447 = vunpack.c.l.b16 %v411
      %v448 = vunpack.c.l.b16 %v412
      %v449 = vunpack.c.l.b16 %v413
      %v450 = vunpack.c.l.b16 %v414
      %v451 = vunpack.c.l.b16 %v415
      %v452 = vunpack.c.l.b16 %v416
      %v453 = vunpack.c.l.b16 %v417
      %v454 = vunpack.c.l.b16 %v418
      %v455 = vunpack.c.l.b16 %v419
      %v456 = vunpack.c.l.b16 %v420
      %v457 = vpack.c.b16 %v442, %v441
      %v458 = vpack.c.b16 %v444, %v443
      %v459 = vpack.c.b16 %v446, %v445
      %v460 = vpack.c.b16 %v448, %v447
      %v461 = vpack.c.b16 %v450, %v449
      %v462 = vpack.c.b16 %v452, %v451
      %v463 = vpack.c.b16 %v454, %v453
      %v464 = vpack.c.b16 %v456, %v455
      %473 = vmatpush.bf16.msra.mxu0 %v464
      %474 = vmatpush.bf16.msra.mxu0 %v463
      %475 = vmatpush.bf16.msra.mxu0 %v462
      %476 = vmatpush.bf16.msra.mxu0 %v461
      %477 = vmatpush.bf16.msra.mxu0 %v460
      %478 = vmatpush.bf16.msra.mxu0 %v459
      %479 = vmatpush.bf16.msra.mxu0 %v458
      %480 = vmatpush.bf16.msra.mxu0 %v457
      %481 = vmatmul.bf16.gmra.mxu0 %v404
      %v482 = vpop.f32.mrf.mxu0
      %v483 = vadd.f32 %v423, %v482
      %v484 = vpop.f32.mrf.mxu0
      %485 = vdwg.mxu0
      %v486 = vxor.u32 %v483, 2147483648
      %v487 = vmul.f32 %v486, 1.442695
      %v488 = vpow.pop %v487
      %v489 = vadd.f32 %v488, 1.0
      %v490 = vrcp.pop %v489
      %v491 = vmul.f32 %v489, %v490
      %v492 = vsub.f32 1.0, %v491
      %v493 = vmul.f32 %v490, %v492
      %v494 = vadd.f32 %v490, %v493
      %vm495 = vweird.f32 %v489
      %vm496 = vweird.f32 %v490
      %vm497 = vmor %vm495, %vm496
      %v498 = vsel %vm497, %v490, %v494
      %v499 = vand.u32 2147483647, %v489
      %vm500 = vcmp.eq.f32.partialorder %v499, 8.507059e+37
      %v501 = vand.u32 %v489, 2147483648
      %v502 = vor.u32 1.1754944e-38, %v501
      %v503 = vsel %vm500, %v502, %v498
      %v504 = vmul.f32 1.0, %v503
      %v505 = vpack.c.bf16 %v504, %v504
      %506 = vst [vmem:[#allocation15] sm:$0xf] %v505
    $region81: #{tpu_custom_call.1} parent=1 // pred_fallthru
      _
    // Predicated region
    $region82: #{tpu_custom_call.1} parent=1 // pred_check
      _
    $region83: #{tpu_custom_call.1} parent=1 // pred_check_branch
      %508 = sbr.rel (0) target = $region85
    $region84: #{tpu_custom_call.1} parent=1 // pred_region
      %510 = vsyncadd [#allocation5], 0
      %s512 = sshll.u32 [#allocation15], 4
      %s513 = int_to_ptr.vmem [resolvable:$true] %s512
      %s514 = sshll.u32 %s11, 4
      %s515 = int_to_ptr.hbm [resolvable:$true] %s514
      %517 = dma.vmem_to_hbm [thread:$0]  %s513, 64, %s515, [#allocation5]
    $region85: #{tpu_custom_call.1} parent=1 // pred_fallthru
      _
    // Predicated region
    $region86: #{tpu_custom_call.1} parent=1 // pred_check
      _
    $region87: #{tpu_custom_call.1} parent=1 // pred_check_branch
      %519 = sbr.rel (0) target = $region89
    $region88: #{tpu_custom_call.1} parent=1 // pred_region
      %521 = vsyncadd [#allocation17], 0
      %s523 = sshll.u32 [#allocation16], 4
      %s524 = int_to_ptr.vmem [resolvable:$true] %s523
      %s525 = sshll.u32 %s12, 4
      %s526 = int_to_ptr.hbm [resolvable:$true] %s525
      %528 = dma.vmem_to_hbm [thread:$0]  %s524, 64, %s526, [#allocation17]
    $region89: #{tpu_custom_call.1} parent=1 // pred_fallthru
      _
    // Predicated region
    $region90: #{tpu_custom_call.1} parent=1 // pred_check
      _
    $region91: #{tpu_custom_call.1} parent=1 // pred_check_branch
      %530 = sbr.rel (0) target = $region93
    $region92: #{tpu_custom_call.1} parent=1 // pred_region
      %532 = vsyncadd [#allocation17], 0
      %s534 = sshll.u32 [#allocation18], 4
      %s535 = int_to_ptr.vmem [resolvable:$true] %s534
      %s536 = sshll.u32 %s13, 4
      %s537 = int_to_ptr.hbm [resolvable:$true] %s536
      %539 = dma.vmem_to_hbm [thread:$0]  %s535, 64, %s537, [#allocation17]
    $region93: #{tpu_custom_call.1} parent=1 // pred_fallthru
      _
    // Predicated region
    $region94: #{tpu_custom_call.1} parent=1 // pred_check
      _
    $region95: #{tpu_custom_call.1} parent=1 // pred_check_branch
      %541 = sbr.rel (0) target = $region97
    $region96: #{tpu_custom_call.1} parent=1 // pred_region
      %543 = dma.done [#allocation5], 64
    $region97: #{tpu_custom_call.1} parent=1 // pred_fallthru
      _
    // Predicated region
    $region98: #{tpu_custom_call.1} parent=1 // pred_check
      _
    $region99: #{tpu_custom_call.1} parent=1 // pred_check_branch
      %545 = sbr.rel (0) target = $region101
    $region100: #{tpu_custom_call.1} parent=1 // pred_region
      %547 = dma.done [#allocation17], 64
    $region101: #{tpu_custom_call.1} parent=1 // pred_fallthru
      _
    // Predicated region
    $region102: #{tpu_custom_call.1} parent=1 // pred_check
      _
    $region103: #{tpu_custom_call.1} parent=1 // pred_check_branch
      %549 = sbr.rel (0) target = $region105
    $region104: #{tpu_custom_call.1} parent=1 // pred_region
      %551 = dma.done [#allocation17], 64
    $region105: #{tpu_custom_call.1} parent=1 // pred_fallthru
      _
    %552 = vsyncpa [#allocation4], 1
    %553 = vsyncpa [#allocation7], 1
    %554 = vsyncpa [#allocation10], 1
    %555 = vsyncpa [#allocation13], 1
    %556 = vsyncpa [#allocation5], 1
    %557 = vsyncpa [#allocation17], 1

// kernel: tpu_custom_call.1
$region0: #{tpu_custom_call.1}
  #allocation0 [shape = 'u32[]', space=smem, size = 0x4, offset = 0x4, fixed_abs, tag = 'smem constant byte address 0x4 - core index']
  #allocation1 [shape = 'u32[72,128]{1,0:T(1,128)}', space=vmem, size = 0x9000, scoped, tag = 'internal scratch']
  #allocation2 [shape = 'f32[8,128]{1,0:T(8,128)}', space=vmem, size = 0x1000, scoped, tag = 'scratch operand']
  %s0 = inlined_call_operand.hbm [shape: f32[8,32], index: 0, kind: input, shape index: {}]
  %s1 = inlined_call_operand.hbm [shape: f32[8,24], index: 1, kind: input, shape index: {}]
  %s2 = inlined_call_operand.hbm [shape: bf16[32,128], index: 2, kind: input, shape index: {}]
  %s3 = inlined_call_operand.vmem [shape: f32[1,128], index: 3, kind: input, shape index: {}]
  %s4 = inlined_call_operand.hbm [shape: bf16[24,128], index: 4, kind: input, shape index: {}]
  %s5 = inlined_call_operand.vmem [shape: f32[1,128], index: 5, kind: input, shape index: {}]
  %s6 = inlined_call_operand.hbm [shape: bf16[128,128], index: 6, kind: input, shape index: {}]
  %s7 = inlined_call_operand.hbm [shape: bf16[128,128], index: 7, kind: input, shape index: {}]
  %s8 = inlined_call_operand.vmem [shape: f32[1,128], index: 8, kind: input, shape index: {}]
  %s9 = inlined_call_operand.hbm [shape: bf16[128,128], index: 9, kind: input, shape index: {}]
  %s10 = inlined_call_operand.vmem [shape: f32[1,128], index: 10, kind: input, shape index: {}]
  %s11 = inlined_call_operand.hbm [shape: bf16[8,128], index: 11, kind: output, shape index: {0}]
  %s12 = inlined_call_operand.hbm [shape: bf16[8,128], index: 12, kind: output, shape index: {1}]
  %s13 = inlined_call_operand.hbm [shape: bf16[8,128], index: 13, kind: output, shape index: {2}]
  %14 = xla_tuple %s11, %s12, %s13
  %s15 = sld [smem:[#allocation0]]
  $region106: #{tpu_custom_call.1} parent=0
    _
  %s17 = ssub.s32 1, %s15
  %s18 = scalar_select 0, %s17, %s15
  $region1: #{tpu_custom_call.1} parent=0
    #allocation3 [shape = 'u8[4096]{0}', space=vmem, size = 0x1000, scoped, tag = 'input window, operand 0, single buffered']
    #allocation4 [shape = 's32[1]{0}', space=sflag, size = 0x4, scoped, tag = 'scoped memory for tpu_custom_call.1']
    #allocation5 [shape = 's32[1]{0}', space=sflag, size = 0x4, scoped, tag = 'scoped memory for tpu_custom_call.1']
    #allocation6 [shape = 'u8[4096]{0}', space=vmem, size = 0x1000, scoped, tag = 'input window, operand 1, single buffered']
    #allocation7 [shape = 's32[1]{0}', space=sflag, size = 0x4, scoped, tag = 'scoped memory for tpu_custom_call.1']
    #allocation8 [shape = 'u8[8192]{0}', space=vmem, size = 0x2000, scoped, tag = 'input window, operand 2, single buffered']
    #allocation9 [shape = 'u8[6144]{0}', space=vmem, size = 0x1800, scoped, tag = 'input window, operand 4, single buffered']
    #allocation10 [shape = 's32[1]{0}', space=sflag, size = 0x4, scoped, tag = 'scoped memory for tpu_custom_call.1']
    #allocation11 [shape = 'u8[32768]{0}', space=vmem, size = 0x8000, scoped, tag = 'input window, operand 6, single buffered']
    #allocation12 [shape = 'u8[32768]{0}', space=vmem, size = 0x8000, scoped, tag = 'input window, operand 7, single buffered']
    #allocation13 [shape = 's32[1]{0}', space=sflag, size = 0x4, scoped, tag = 'scoped memory for tpu_custom_call.1']
    #allocation14 [shape = 'u8[32768]{0}', space=vmem, size = 0x8000, scoped, tag = 'input window, operand 9, single buffered']
    #allocation15 [shape = 'u8[2048]{0}', space=vmem, size = 0x800, scoped, tag = 'output window, operand 0, single buffered']
    #allocation16 [shape = 'u8[2048]{0}', space=vmem, size = 0x800, scoped, tag = 'output window, operand 1, single buffered']
    #allocation17 [shape = 's32[1]{0}', space=sflag, size = 0x4, scoped, tag = 'scoped memory for tpu_custom_call.1']
    #allocation18 [shape = 'u8[2048]{0}', space=vmem, size = 0x800, scoped, tag = 'output window, operand 2, single buffered']
    %19 = vsyncpa [#allocation4], 0
    %20 = vsyncpa [#allocation7], 0
    %21 = vsyncpa [#allocation10], 0
    %22 = vsyncpa [#allocation13], 0
    %23 = vsyncpa [#allocation5], 0
    %24 = vsyncpa [#allocation17], 0
    // Predicated region
    $region2: #{tpu_custom_call.1} parent=1 // pred_check
      _
    $region3: #{tpu_custom_call.1} parent=1 // pred_check_branch
      %26 = sbr.rel (0) target = $region5
    $region4: #{tpu_custom_call.1} parent=1 // pred_region
      %28 = vsyncadd [#allocation4], 0
      %s30 = sshll.u32 %s0, 4
      %s31 = int_to_ptr.hbm [resolvable:$true] %s30
      %s32 = sshll.u32 [#allocation3], 4
      %s33 = int_to_ptr.vmem [resolvable:$true] %s32
      %35 = dma.hbm_to_vmem [thread:$0]  %s31, 128, %s33, [#allocation4]
    $region5: #{tpu_custom_call.1} parent=1 // pred_fallthru
      _
    // Predicated region
    $region6: #{tpu_custom_call.1} parent=1 // pred_check
      _
    $region7: #{tpu_custom_call.1} parent=1 // pred_check_branch
      %37 = sbr.rel (0) target = $region9
    $region8: #{tpu_custom_call.1} parent=1 // pred_region
      %39 = vsyncadd [#allocation7], 0
      %s41 = sshll.u32 %s1, 4
      %s42 = int_to_ptr.hbm [resolvable:$true] %s41
      %s43 = sshll.u32 [#allocation6], 4
      %s44 = int_to_ptr.vmem [resolvable:$true] %s43
      %46 = dma.hbm_to_vmem [thread:$0]  %s42, 128, %s44, [#allocation7]
    $region9: #{tpu_custom_call.1} parent=1 // pred_fallthru
      _
    // Predicated region
    $region10: #{tpu_custom_call.1} parent=1 // pred_check
      _
    $region11: #{tpu_custom_call.1} parent=1 // pred_check_branch
      %48 = sbr.rel (0) target = $region13
    $region12: #{tpu_custom_call.1} parent=1 // pred_region
      %50 = vsyncadd [#allocation7], 0
      %s51 = sshll.u32 %s2, 4
      %s52 = int_to_ptr.hbm [resolvable:$true] %s51
      %s53 = sshll.u32 [#allocation8], 4
      %s54 = int_to_ptr.vmem [resolvable:$true] %s53
      %59 = dma.hbm_to_vmem [thread:$0]  %s52, 256, %s54, [#allocation7], 64, 64, 4
    $region13: #{tpu_custom_call.1} parent=1 // pred_fallthru
      _
    // Predicated region
    $region14: #{tpu_custom_call.1} parent=1 // pred_check
      _
    $region15: #{tpu_custom_call.1} parent=1 // pred_check_branch
      %61 = sbr.rel (0) target = $region17
    $region16: #{tpu_custom_call.1} parent=1 // pred_region
      _
    $region17: #{tpu_custom_call.1} parent=1 // pred_fallthru
      _
    // Predicated region
    $region18: #{tpu_custom_call.1} parent=1 // pred_check
      _
    $region19: #{tpu_custom_call.1} parent=1 // pred_check_branch
      %63 = sbr.rel (0) target = $region21
    $region20: #{tpu_custom_call.1} parent=1 // pred_region
      %65 = vsyncadd [#allocation10], 0
      %s66 = sshll.u32 %s4, 4
      %s67 = int_to_ptr.hbm [resolvable:$true] %s66
      %s68 = sshll.u32 [#allocation9], 4
      %s69 = int_to_ptr.vmem [resolvable:$true] %s68
      %74 = dma.hbm_to_vmem [thread:$0]  %s67, 192, %s69, [#allocation10], 64, 64, 4
    $region21: #{tpu_custom_call.1} parent=1 // pred_fallthru
      _
    // Predicated region
    $region22: #{tpu_custom_call.1} parent=1 // pred_check
      _
    $region23: #{tpu_custom_call.1} parent=1 // pred_check_branch
      %76 = sbr.rel (0) target = $region25
    $region24: #{tpu_custom_call.1} parent=1 // pred_region
      _
    $region25: #{tpu_custom_call.1} parent=1 // pred_fallthru
      _
    // Predicated region
    $region26: #{tpu_custom_call.1} parent=1 // pred_check
      _
    $region27: #{tpu_custom_call.1} parent=1 // pred_check_branch
      %78 = sbr.rel (0) target = $region29
    $region28: #{tpu_custom_call.1} parent=1 // pred_region
      %80 = vsyncadd [#allocation10], 0
      %s81 = sshll.u32 %s6, 4
      %s82 = int_to_ptr.hbm [resolvable:$true] %s81
      %s83 = sshll.u32 [#allocation11], 4
      %s84 = int_to_ptr.vmem [resolvable:$true] %s83
      %89 = dma.hbm_to_vmem [thread:$0]  %s82, 1024, %s84, [#allocation10], 64, 64, 4
    $region29: #{tpu_custom_call.1} parent=1 // pred_fallthru
      _
    // Predicated region
    $region30: #{tpu_custom_call.1} parent=1 // pred_check
      _
    $region31: #{tpu_custom_call.1} parent=1 // pred_check_branch
      %91 = sbr.rel (0) target = $region33
    $region32: #{tpu_custom_call.1} parent=1 // pred_region
      %93 = vsyncadd [#allocation13], 0
      %s94 = sshll.u32 %s7, 4
      %s95 = int_to_ptr.hbm [resolvable:$true] %s94
      %s96 = sshll.u32 [#allocation12], 4
      %s97 = int_to_ptr.vmem [resolvable:$true] %s96
      %102 = dma.hbm_to_vmem [thread:$0]  %s95, 1024, %s97, [#allocation13], 64, 64, 4
    $region33: #{tpu_custom_call.1} parent=1 // pred_fallthru
      _
    // Predicated region
    $region34: #{tpu_custom_call.1} parent=1 // pred_check
      _
    $region35: #{tpu_custom_call.1} parent=1 // pred_check_branch
      %104 = sbr.rel (0) target = $region37
    $region36: #{tpu_custom_call.1} parent=1 // pred_region
      _
    $region37: #{tpu_custom_call.1} parent=1 // pred_fallthru
      _
    // Predicated region
    $region38: #{tpu_custom_call.1} parent=1 // pred_check
      _
    $region39: #{tpu_custom_call.1} parent=1 // pred_check_branch
      %106 = sbr.rel (0) target = $region41
    $region40: #{tpu_custom_call.1} parent=1 // pred_region
      %108 = vsyncadd [#allocation13], 0
      %s109 = sshll.u32 %s9, 4
      %s110 = int_to_ptr.hbm [resolvable:$true] %s109
      %s111 = sshll.u32 [#allocation14], 4
      %s112 = int_to_ptr.vmem [resolvable:$true] %s111
      %117 = dma.hbm_to_vmem [thread:$0]  %s110, 1024, %s112, [#allocation13], 64, 64, 4
    $region41: #{tpu_custom_call.1} parent=1 // pred_fallthru
      _
    // Predicated region
    $region42: #{tpu_custom_call.1} parent=1 // pred_check
      _
    $region43: #{tpu_custom_call.1} parent=1 // pred_check_branch
      %119 = sbr.rel (0) target = $region45
    $region44: #{tpu_custom_call.1} parent=1 // pred_region
      _
    $region45: #{tpu_custom_call.1} parent=1 // pred_fallthru
      _
    // Predicated region
    $region46: #{tpu_custom_call.1} parent=1 // pred_check
      _
    $region47: #{tpu_custom_call.1} parent=1 // pred_check_branch
      %121 = sbr.rel (0) target = $region49
    $region48: #{tpu_custom_call.1} parent=1 // pred_region
      %123 = dma.done [#allocation4], 128
    $region49: #{tpu_custom_call.1} parent=1 // pred_fallthru
      _
    // Predicated region
    $region50: #{tpu_custom_call.1} parent=1 // pred_check
      _
    $region51: #{tpu_custom_call.1} parent=1 // pred_check_branch
      %125 = sbr.rel (0) target = $region53
    $region52: #{tpu_custom_call.1} parent=1 // pred_region
      %127 = dma.done [#allocation7], 128
    $region53: #{tpu_custom_call.1} parent=1 // pred_fallthru
      _
    // Predicated region
    $region54: #{tpu_custom_call.1} parent=1 // pred_check
      _
    $region55: #{tpu_custom_call.1} parent=1 // pred_check_branch
      %129 = sbr.rel (0) target = $region57
    $region56: #{tpu_custom_call.1} parent=1 // pred_region
      %131 = dma.done [#allocation7], 256
    $region57: #{tpu_custom_call.1} parent=1 // pred_fallthru
      _
    // Predicated region
    $region58: #{tpu_custom_call.1} parent=1 // pred_check
      _
    $region59: #{tpu_custom_call.1} parent=1 // pred_check_branch
      %133 = sbr.rel (0) target = $region61
    $region60: #{tpu_custom_call.1} parent=1 // pred_region
      %135 = dma.done [#allocation10], 192
    $region61: #{tpu_custom_call.1} parent=1 // pred_fallthru
      _
    // Predicated region
    $region62: #{tpu_custom_call.1} parent=1 // pred_check
      _
    $region63: #{tpu_custom_call.1} parent=1 // pred_check_branch
      %137 = sbr.rel (0) target = $region65
    $region64: #{tpu_custom_call.1} parent=1 // pred_region
      %139 = dma.done [#allocation10], 1024
    $region65: #{tpu_custom_call.1} parent=1 // pred_fallthru
      _
    // Predicated region
    $region66: #{tpu_custom_call.1} parent=1 // pred_check
      _
    $region67: #{tpu_custom_call.1} parent=1 // pred_check_branch
      %141 = sbr.rel (0) target = $region69
    $region68: #{tpu_custom_call.1} parent=1 // pred_region
      %143 = dma.done [#allocation13], 1024
    $region69: #{tpu_custom_call.1} parent=1 // pred_fallthru
      _
    // Predicated region
    $region70: #{tpu_custom_call.1} parent=1 // pred_check
      _
    $region71: #{tpu_custom_call.1} parent=1 // pred_check_branch
      %145 = sbr.rel (0) target = $region73
    $region72: #{tpu_custom_call.1} parent=1 // pred_region
      %147 = dma.done [#allocation13], 1024
    $region73: #{tpu_custom_call.1} parent=1 // pred_fallthru
      _
    %p149 = scmp.eq.s32.totalorder 0, 0
    // Predicated region
    $region74: #{tpu_custom_call.1} parent=1 // pred_check
      %p150 = pneg %p149
    $region75: #{tpu_custom_call.1} parent=1 // pred_check_branch
      %152 = sbr.rel (%p150) target = $region77
    $region76: #{tpu_custom_call.1} parent=1 // pred_region
      %153 = vst [vmem:[#allocation2] sm:$0xff] 0.0
    $region77: #{tpu_custom_call.1} parent=1 // pred_fallthru
      _
    %v154 = vld [vmem:[#allocation2] sm:$0xff]
    %v155 = vld [vmem:[#allocation3] sm:$0xff]
    %v156 = vpack.c.bf16 %v155, %v155
    %v157 = vld [vmem:[#allocation8] sm:$0xf]
    %v158 = vld [vmem:[#allocation8 + $0x4] sm:$0xf]
    %v159 = vld [vmem:[#allocation8 + $0x8] sm:$0xf]
    %v160 = vld [vmem:[#allocation8 + $0xc] sm:$0xf]
    %v165 = vunpack.c.l.b16 %v157
    %v166 = vunpack.c.l.b16 %v158
    %v167 = vunpack.c.l.b16 %v159
    %v168 = vunpack.c.l.b16 %v160
    %v169 = vpack.c.b16 %v166, %v165
    %v170 = vpack.c.b16 %v168, %v167
    %vm173 = vcmask 261120
    %v175 = vsel %vm173, %v156, 0
    %177 = vmatpush.bf16.msra.mxu0 0
    %178 = vmatpush.bf16.msra.mxu0 0
    %179 = vmatpush.bf16.msra.mxu0 0
    %180 = vmatpush.bf16.msra.mxu0 0
    %181 = vmatpush.bf16.msra.mxu0 0
    %182 = vmatpush.bf16.msra.mxu0 0
    %183 = vmatpush.bf16.msra.mxu0 %v170
    %184 = vmatpush.bf16.msra.mxu0 %v169
    %185 = vmatmul.bf16.gmra.mxu0 %v175
    %v186 = vpop.f32.mrf.mxu0
    %v187 = vadd.f32 0.0, %v186
    %v188 = vpop.f32.mrf.mxu0
    %189 = vdwg.mxu0
    %v190 = vadd.f32 %v154, %v187
    %191 = vst [vmem:[#allocation2] sm:$0xff] %v190
    // Predicated region
    $region78: #{tpu_custom_call.1} parent=1 // pred_check
      %p192 = pneg %p149
    $region79: #{tpu_custom_call.1} parent=1 // pred_check_branch
      %194 = sbr.rel (%p192) target = $region81
    $region80: #{tpu_custom_call.1} parent=1 // pred_region
      %v195 = vld [vmem:[#allocation2] sm:$0xff]
      %v196 = vld [vmem:[%s3] sm:$0x1]
      %v198 = vperm.slane %v196, 0
      %v200 = vadd.f32 %v195, %v198
      %v201 = vld [vmem:[#allocation6] sm:$0xff]
      %v202 = vpack.c.bf16 %v201, %v201
      %v203 = vld [vmem:[#allocation9] sm:$0xf]
      %v204 = vld [vmem:[#allocation9 + $0x4] sm:$0xf]
      %v205 = vld [vmem:[#allocation9 + $0x8] sm:$0xf]
      %v206 = vld [vmem:[%s5] sm:$0x1]
      %v208 = vperm.slane %v206, 0
      %v213 = vunpack.c.l.b16 %v203
      %v214 = vunpack.c.l.b16 %v204
      %v215 = vunpack.c.l.b16 %v205
      %v216 = vpack.c.b16 %v214, %v213
      %v217 = vpack.c.b16 %v215, %v215
      %vm219 = vcmask 195584
      %v221 = vsel %vm219, %v202, 0
      %vm223 = vcmask 1043456
      %v225 = vsel %vm223, %v217, 0
      %227 = vmatpush.bf16.msra.mxu0 0
      %228 = vmatpush.bf16.msra.mxu0 0
      %229 = vmatpush.bf16.msra.mxu0 0
      %230 = vmatpush.bf16.msra.mxu0 0
      %231 = vmatpush.bf16.msra.mxu0 0
      %232 = vmatpush.bf16.msra.mxu0 0
      %233 = vmatpush.bf16.msra.mxu0 %v225
      %234 = vmatpush.bf16.msra.mxu0 %v216
      %235 = vmatmul.bf16.gmra.mxu0 %v221
      %v236 = vpop.f32.mrf.mxu0
      %v237 = vadd.f32 %v208, %v236
      %v238 = vpop.f32.mrf.mxu0
      %239 = vdwg.mxu0
      %v240 = vpack.c.bf16 %v200, %v200
      %241 = vst [vmem:[#allocation16] sm:$0xf] %v240
      %v242 = vpack.c.bf16 %v237, %v237
      %243 = vst [vmem:[#allocation18] sm:$0xf] %v242
      %v244 = vld [vmem:[#allocation11] sm:$0xf]
      %v245 = vld [vmem:[#allocation11 + $0x4] sm:$0xf]
      %v246 = vld [vmem:[#allocation11 + $0x8] sm:$0xf]
      %v247 = vld [vmem:[#allocation11 + $0xc] sm:$0xf]
      %v248 = vld [vmem:[#allocation11 + $0x10] sm:$0xf]
      %v249 = vld [vmem:[#allocation11 + $0x14] sm:$0xf]
      %v250 = vld [vmem:[#allocation11 + $0x18] sm:$0xf]
      %v251 = vld [vmem:[#allocation11 + $0x1c] sm:$0xf]
      %v252 = vld [vmem:[#allocation11 + $0x20] sm:$0xf]
      %v253 = vld [vmem:[#allocation11 + $0x24] sm:$0xf]
      %v254 = vld [vmem:[#allocation11 + $0x28] sm:$0xf]
      %v255 = vld [vmem:[#allocation11 + $0x2c] sm:$0xf]
      %v256 = vld [vmem:[#allocation11 + $0x30] sm:$0xf]
      %v257 = vld [vmem:[#allocation11 + $0x34] sm:$0xf]
      %v258 = vld [vmem:[#allocation11 + $0x38] sm:$0xf]
      %v259 = vld [vmem:[#allocation11 + $0x3c] sm:$0xf]
      %v260 = vld [vmem:[#allocation12] sm:$0xf]
      %v261 = vld [vmem:[#allocation12 + $0x4] sm:$0xf]
      %v262 = vld [vmem:[#allocation12 + $0x8] sm:$0xf]
      %v263 = vld [vmem:[#allocation12 + $0xc] sm:$0xf]
      %v264 = vld [vmem:[#allocation12 + $0x10] sm:$0xf]
      %v265 = vld [vmem:[#allocation12 + $0x14] sm:$0xf]
      %v266 = vld [vmem:[#allocation12 + $0x18] sm:$0xf]
      %v267 = vld [vmem:[#allocation12 + $0x1c] sm:$0xf]
      %v268 = vld [vmem:[#allocation12 + $0x20] sm:$0xf]
      %v269 = vld [vmem:[#allocation12 + $0x24] sm:$0xf]
      %v270 = vld [vmem:[#allocation12 + $0x28] sm:$0xf]
      %v271 = vld [vmem:[#allocation12 + $0x2c] sm:$0xf]
      %v272 = vld [vmem:[#allocation12 + $0x30] sm:$0xf]
      %v273 = vld [vmem:[#allocation12 + $0x34] sm:$0xf]
      %v274 = vld [vmem:[#allocation12 + $0x38] sm:$0xf]
      %v275 = vld [vmem:[#allocation12 + $0x3c] sm:$0xf]
      %v292 = vunpack.c.l.b16 %v260
      %v293 = vunpack.c.l.b16 %v261
      %v294 = vunpack.c.l.b16 %v262
      %v295 = vunpack.c.l.b16 %v263
      %v296 = vunpack.c.l.b16 %v264
      %v297 = vunpack.c.l.b16 %v265
      %v298 = vunpack.c.l.b16 %v266
      %v299 = vunpack.c.l.b16 %v267
      %v300 = vunpack.c.l.b16 %v268
      %v301 = vunpack.c.l.b16 %v269
      %v302 = vunpack.c.l.b16 %v270
      %v303 = vunpack.c.l.b16 %v271
      %v304 = vunpack.c.l.b16 %v272
      %v305 = vunpack.c.l.b16 %v273
      %v306 = vunpack.c.l.b16 %v274
      %v307 = vunpack.c.l.b16 %v275
      %v308 = vpack.c.b16 %v293, %v292
      %v309 = vpack.c.b16 %v295, %v294
      %v310 = vpack.c.b16 %v297, %v296
      %v311 = vpack.c.b16 %v299, %v298
      %v312 = vpack.c.b16 %v301, %v300
      %v313 = vpack.c.b16 %v303, %v302
      %v314 = vpack.c.b16 %v305, %v304
      %v315 = vpack.c.b16 %v307, %v306
      %324 = vmatpush.bf16.msra.mxu0 %v315
      %325 = vmatpush.bf16.msra.mxu0 %v314
      %326 = vmatpush.bf16.msra.mxu0 %v313
      %327 = vmatpush.bf16.msra.mxu0 %v312
      %328 = vmatpush.bf16.msra.mxu0 %v311
      %329 = vmatpush.bf16.msra.mxu0 %v310
      %330 = vmatpush.bf16.msra.mxu0 %v309
      %331 = vmatpush.bf16.msra.mxu0 %v308
      %332 = vmatmul.bf16.gmra.mxu0 %v242
      %v333 = vpop.f32.mrf.mxu0
      %v334 = vadd.f32 0.0, %v333
      %v335 = vpop.f32.mrf.mxu0
      %336 = vdwg.mxu0
      %v353 = vunpack.c.l.b16 %v244
      %v354 = vunpack.c.l.b16 %v245
      %v355 = vunpack.c.l.b16 %v246
      %v356 = vunpack.c.l.b16 %v247
      %v357 = vunpack.c.l.b16 %v248
      %v358 = vunpack.c.l.b16 %v249
      %v359 = vunpack.c.l.b16 %v250
      %v360 = vunpack.c.l.b16 %v251
      %v361 = vunpack.c.l.b16 %v252
      %v362 = vunpack.c.l.b16 %v253
      %v363 = vunpack.c.l.b16 %v254
      %v364 = vunpack.c.l.b16 %v255
      %v365 = vunpack.c.l.b16 %v256
      %v366 = vunpack.c.l.b16 %v257
      %v367 = vunpack.c.l.b16 %v258
      %v368 = vunpack.c.l.b16 %v259
      %v369 = vpack.c.b16 %v354, %v353
      %v370 = vpack.c.b16 %v356, %v355
      %v371 = vpack.c.b16 %v358, %v357
      %v372 = vpack.c.b16 %v360, %v359
      %v373 = vpack.c.b16 %v362, %v361
      %v374 = vpack.c.b16 %v364, %v363
      %v375 = vpack.c.b16 %v366, %v365
      %v376 = vpack.c.b16 %v368, %v367
      %385 = vmatpush.bf16.msra.mxu0 %v376
      %386 = vmatpush.bf16.msra.mxu0 %v375
      %387 = vmatpush.bf16.msra.mxu0 %v374
      %388 = vmatpush.bf16.msra.mxu0 %v373
      %389 = vmatpush.bf16.msra.mxu0 %v372
      %390 = vmatpush.bf16.msra.mxu0 %v371
      %391 = vmatpush.bf16.msra.mxu0 %v370
      %392 = vmatpush.bf16.msra.mxu0 %v369
      %393 = vmatmul.bf16.gmra.mxu0 %v240
      %v394 = vpop.f32.mrf.mxu0
      %v395 = vadd.f32 %v334, %v394
      %v396 = vpop.f32.mrf.mxu0
      %397 = vdwg.mxu0
      %v398 = vld [vmem:[%s8] sm:$0x1]
      %v400 = vperm.slane %v398, 0
      %v402 = vadd.f32 %v395, %v400
      %v403 = vmax.f32 %v402, 0.0
      %v404 = vpack.c.bf16 %v403, %v403
      %v405 = vld [vmem:[#allocation14] sm:$0xf]
      %v406 = vld [vmem:[#allocation14 + $0x4] sm:$0xf]
      %v407 = vld [vmem:[#allocation14 + $0x8] sm:$0xf]
      %v408 = vld [vmem:[#allocation14 + $0xc] sm:$0xf]
      %v409 = vld [vmem:[#allocation14 + $0x10] sm:$0xf]
      %v410 = vld [vmem:[#allocation14 + $0x14] sm:$0xf]
      %v411 = vld [vmem:[#allocation14 + $0x18] sm:$0xf]
      %v412 = vld [vmem:[#allocation14 + $0x1c] sm:$0xf]
      %v413 = vld [vmem:[#allocation14 + $0x20] sm:$0xf]
      %v414 = vld [vmem:[#allocation14 + $0x24] sm:$0xf]
      %v415 = vld [vmem:[#allocation14 + $0x28] sm:$0xf]
      %v416 = vld [vmem:[#allocation14 + $0x2c] sm:$0xf]
      %v417 = vld [vmem:[#allocation14 + $0x30] sm:$0xf]
      %v418 = vld [vmem:[#allocation14 + $0x34] sm:$0xf]
      %v419 = vld [vmem:[#allocation14 + $0x38] sm:$0xf]
      %v420 = vld [vmem:[#allocation14 + $0x3c] sm:$0xf]
      %v421 = vld [vmem:[%s10] sm:$0x1]
      %v423 = vperm.slane %v421, 0
      %v441 = vunpack.c.l.b16 %v405
      %v442 = vunpack.c.l.b16 %v406
      %v443 = vunpack.c.l.b16 %v407
      %v444 = vunpack.c.l.b16 %v408
      %v445 = vunpack.c.l.b16 %v409
      %v446 = vunpack.c.l.b16 %v410
      %v447 = vunpack.c.l.b16 %v411
      %v448 = vunpack.c.l.b16 %v412
      %v449 = vunpack.c.l.b16 %v413
      %v450 = vunpack.c.l.b16 %v414
      %v451 = vunpack.c.l.b16 %v415
      %v452 = vunpack.c.l.b16 %v416
      %v453 = vunpack.c.l.b16 %v417
      %v454 = vunpack.c.l.b16 %v418
      %v455 = vunpack.c.l.b16 %v419
      %v456 = vunpack.c.l.b16 %v420
      %v457 = vpack.c.b16 %v442, %v441
      %v458 = vpack.c.b16 %v444, %v443
      %v459 = vpack.c.b16 %v446, %v445
      %v460 = vpack.c.b16 %v448, %v447
      %v461 = vpack.c.b16 %v450, %v449
      %v462 = vpack.c.b16 %v452, %v451
      %v463 = vpack.c.b16 %v454, %v453
      %v464 = vpack.c.b16 %v456, %v455
      %473 = vmatpush.bf16.msra.mxu0 %v464
      %474 = vmatpush.bf16.msra.mxu0 %v463
      %475 = vmatpush.bf16.msra.mxu0 %v462
      %476 = vmatpush.bf16.msra.mxu0 %v461
      %477 = vmatpush.bf16.msra.mxu0 %v460
      %478 = vmatpush.bf16.msra.mxu0 %v459
      %479 = vmatpush.bf16.msra.mxu0 %v458
      %480 = vmatpush.bf16.msra.mxu0 %v457
      %481 = vmatmul.bf16.gmra.mxu0 %v404
      %v482 = vpop.f32.mrf.mxu0
      %v483 = vadd.f32 %v423, %v482
      %v484 = vpop.f32.mrf.mxu0
      %485 = vdwg.mxu0
      %v486 = vxor.u32 %v483, 2147483648
      %v487 = vmul.f32 %v486, 1.442695
      %v488 = vpow.pop %v487
      %v489 = vadd.f32 %v488, 1.0
      %v490 = vrcp.pop %v489
      %v491 = vmul.f32 %v489, %v490
      %v492 = vsub.f32 1.0, %v491
      %v493 = vmul.f32 %v490, %v492
      %v494 = vadd.f32 %v490, %v493
      %vm495 = vweird.f32 %v489
      %vm496 = vweird.f32 %v490
      %vm497 = vmor %vm495, %vm496
      %v498 = vsel %vm497, %v490, %v494
      %v499 = vand.u32 2147483647, %v489
      %vm500 = vcmp.eq.f32.partialorder %v499, 8.507059e+37
      %v501 = vand.u32 %v489, 2147483648
      %v502 = vor.u32 1.1754944e-38, %v501
      %v503 = vsel %vm500, %v502, %v498
      %v504 = vmul.f32 1.0, %v503
      %v505 = vpack.c.bf16 %v504, %v504
      %506 = vst [vmem:[#allocation15] sm:$0xf] %v505
    $region81: #{tpu_custom_call.1} parent=1 // pred_fallthru
      _
    // Predicated region
    $region82: #{tpu_custom_call.1} parent=1 // pred_check
      _
    $region83: #{tpu_custom_call.1} parent=1 // pred_check_branch
      %508 = sbr.rel (0) target = $region85
    $region84: #{tpu_custom_call.1} parent=1 // pred_region
      %510 = vsyncadd [#allocation5], 0
      %s512 = sshll.u32 [#allocation15], 4
      %s513 = int_to_ptr.vmem [resolvable:$true] %s512
      %s514 = sshll.u32 %s11, 4
      %s515 = int_to_ptr.hbm [resolvable:$true] %s514
      %517 = dma.vmem_to_hbm [thread:$0]  %s513, 64, %s515, [#allocation5]
    $region85: #{tpu_custom_call.1} parent=1 // pred_fallthru
      _
    // Predicated region
    $region86: #{tpu_custom_call.1} parent=1 // pred_check
      _
    $region87: #{tpu_custom_call.1} parent=1 // pred_check_branch
      %519 = sbr.rel (0) target = $region89
    $region88: #{tpu_custom_call.1} parent=1 // pred_region
      %521 = vsyncadd [#allocation17], 0
      %s523 = sshll.u32 [#allocation16], 4
      %s524 = int_to_ptr.vmem [resolvable:$true] %s523
      %s525 = sshll.u32 %s12, 4
      %s526 = int_to_ptr.hbm [resolvable:$true] %s525
      %528 = dma.vmem_to_hbm [thread:$0]  %s524, 64, %s526, [#allocation17]
    $region89: #{tpu_custom_call.1} parent=1 // pred_fallthru
      _
    // Predicated region
    $region90: #{tpu_custom_call.1} parent=1 // pred_check
      _
    $region91: #{tpu_custom_call.1} parent=1 // pred_check_branch
      %530 = sbr.rel (0) target = $region93
    $region92: #{tpu_custom_call.1} parent=1 // pred_region
      %532 = vsyncadd [#allocation17], 0
      %s534 = sshll.u32 [#allocation18], 4
      %s535 = int_to_ptr.vmem [resolvable:$true] %s534
      %s536 = sshll.u32 %s13, 4
      %s537 = int_to_ptr.hbm [resolvable:$true] %s536
      %539 = dma.vmem_to_hbm [thread:$0]  %s535, 64, %s537, [#allocation17]
    $region93: #{tpu_custom_call.1} parent=1 // pred_fallthru
      _
    // Predicated region
    $region94: #{tpu_custom_call.1} parent=1 // pred_check
      _
    $region95: #{tpu_custom_call.1} parent=1 // pred_check_branch
      %541 = sbr.rel (0) target = $region97
    $region96: #{tpu_custom_call.1} parent=1 // pred_region
      %543 = dma.done [#allocation5], 64
    $region97: #{tpu_custom_call.1} parent=1 // pred_fallthru
      _
    // Predicated region
    $region98: #{tpu_custom_call.1} parent=1 // pred_check
      _
    $region99: #{tpu_custom_call.1} parent=1 // pred_check_branch
      %545 = sbr.rel (0) target = $region101
    $region100: #{tpu_custom_call.1} parent=1 // pred_region
      %547 = dma.done [#allocation17], 64
    $region101: #{tpu_custom_call.1} parent=1 // pred_fallthru
      _
    // Predicated region
    $region102: #{tpu_custom_call.1} parent=1 // pred_check
      _
    $region103: #{tpu_custom_call.1} parent=1 // pred_check_branch
      %549 = sbr.rel (0) target = $region105
    $region104: #{tpu_custom_call.1} parent=1 // pred_region
      %551 = dma.done [#allocation17], 64
    $region105: #{tpu_custom_call.1} parent=1 // pred_fallthru
      _
    %552 = vsyncpa [#allocation4], 1
    %553 = vsyncpa [#allocation7], 1
    %554 = vsyncpa [#allocation10], 1
    %555 = vsyncpa [#allocation13], 1
    %556 = vsyncpa [#allocation5], 1
    %557 = vsyncpa [#allocation17], 1

</llo_original>
